<compile_context>
chip_gen: v7x
topology: tpu7x:2x2x1
jax: 0.10.0
libtpu: 0.0.40
codegen_flags: <defaults>
</compile_context>

<pallas_src>
import functools

import numpy as np
import jax
import jax.numpy as jnp
from jax import lax
from jax.experimental import pallas as pl
from jax.experimental.pallas import tpu as pltpu

_NN = 8  # trilinear neighbors

# Neighbor offsets in torch.meshgrid(indexing='ij') order:
# (0,0,0),(0,0,1),(0,1,0),(0,1,1),(1,0,0),(1,0,1),(1,1,0),(1,1,1)
_NEIGHBOR_OFFSETS = np.stack(
    np.meshgrid(np.array([0.0, 1.0]), np.array([0.0, 1.0]), np.array([0.0, 1.0]),
                indexing="ij"),
    axis=-1,
).reshape(-1, 3)


def _round_up(x, m):
    return ((x + m - 1) // m) * m


def _grid_interp_kernel(pts_ref, grid_ref, lat_ref, w_ref, xloc_ref, acc_ref, *,
                        D, H, W, TP, KT, xmin, xmax):
    """One (batch, point-tile, DHW-chunk) per grid step; grid=(bs, PT, NK).

    pts_ref : (1, 3, TP)      f32   query points, point index on lanes
    grid_ref: (1, C, KT)      latent grid chunk, channels on sublanes
    lat_ref : (1, C, 8*TP)    gathered latents, columns ordered n*TP + p
    w_ref   : (1, 8, TP)      trilinear weights
    xloc_ref: (1, 3, 8, TP)   relative coordinates, axis-major
    acc_ref : (C, 8*TP) f32   scratch accumulator across the K (DHW) chunks
    """
    k = pl.program_id(2)
    nk = pl.num_programs(2)

    cube = (1.0 / (D - 1), 1.0 / (H - 1), 1.0 / (W - 1))
    strides = (H * W, W, 1)

    pts = pts_ref[0]                                              # (3, TP)
    # Offset bit for axis a of neighbor n: axis0=bit2, axis1=bit1, axis2=bit0.
    n_iota = lax.broadcasted_iota(jnp.int32, (_NN, 1), 0)         # (8, 1)

    flat_idx = jnp.zeros((_NN, TP), jnp.int32)
    p_l, ind0_l, off_l = [], [], []
    for a in range(3):
        off_a = ((n_iota >> (2 - a)) & 1).astype(jnp.float32)     # (8, 1)
        p_a = (pts[a:a + 1, :] - xmin[a]) / (xmax[a] - xmin[a])   # (1, TP)
        p_a = jnp.clip(p_a, 1e-6, 1.0 - 1e-6)
        ind0_a = jnp.floor(p_a / cube[a])                         # (1, TP)
        flat_idx = flat_idx + (ind0_a + off_a).astype(jnp.int32) * strides[a]
        p_l.append(p_a)
        ind0_l.append(ind0_a)
        off_l.append(off_a)

    # Weights / relative coords depend only on the point tile; compute + store
    # once (the small output blocks stay resident across the K axis).
    @pl.when(k == 0)
    def _():
        acc_ref[...] = jnp.zeros_like(acc_ref)
        w = jnp.ones((_NN, TP), jnp.float32)
        for a in range(3):
            xyz0 = ind0_l[a] * cube[a]                            # (1, TP)
            xyz_nbr = xyz0 + off_l[a] * cube[a]                   # (8, TP)
            xyz_oppo = xyz0 + (1.0 - off_l[a]) * cube[a]          # (8, TP)
            w = w * (jnp.abs(p_l[a] - xyz_oppo) / cube[a])
            xloc_ref[0, a] = (p_l[a] - xyz_nbr) / cube[a]
        w_ref[0] = w

    # One-hot gather of the 8 neighbor codes from this DHW chunk on the MXU.
    # TODO(synk): a (d,h)/(w) factorized one-hot would cut the VPU compare count
    # further for very large grids; kept as 8 direct selection matmuls here.
    g = grid_ref[0]                                               # (C, KT)
    local_idx = flat_idx - k * KT                                 # (8, TP)
    row_iota = lax.broadcasted_iota(jnp.int32, (KT, TP), 0)       # hoisted
    for n in range(_NN):
        onehot = (row_iota == local_idx[n:n + 1, :]).astype(g.dtype)  # (KT, TP)
        acc_ref[:, n * TP:(n + 1) * TP] += jnp.dot(
            g, onehot, preferred_element_type=jnp.float32)

    @pl.when(k == nk - 1)
    def _():
        lat_ref[0] = acc_ref[...].astype(lat_ref.dtype)


def grid_interpolation(grid, pts, xmin=(0.0, 0.0, 0.0), xmax=(1.0, 1.0, 1.0),
                       *, tp=256, kt=512):
    """Pallas implementation of GridInterpolationLayer.forward.

    grid: (bs, d, h, w, code_len) float32
    pts : (bs, npoints, 3)        float32, xmin <= pts <= xmax
    Returns lat (bs,P,8,C), weight (bs,P,8), xloc (bs,P,8,3).
    """
    bs, D, H, W, C = grid.shape
    _, P, _ = pts.shape
    DHW = D * H * W

    TP = min(tp, _round_up(P, 128))       # points per tile (lane axis)
    KT = min(kt, _round_up(DHW, 128))     # DHW cells per reduction chunk
    P_pad = _round_up(P, TP)
    DHW_pad = _round_up(DHW, KT)
    PT = P_pad // TP
    NK = DHW_pad // KT

    # Lane-dense layouts: channels / axes on sublanes, points / cells on lanes.
    grid_t = jnp.transpose(grid.reshape(bs, DHW, C), (0, 2, 1))   # (bs, C, DHW)
    if DHW_pad != DHW:
        grid_t = jnp.pad(grid_t, ((0, 0), (0, 0), (0, DHW_pad - DHW)))
    pts_t = jnp.transpose(pts, (0, 2, 1))                         # (bs, 3, P)
    if P_pad != P:
        pts_t = jnp.pad(pts_t, ((0, 0), (0, 0), (0, P_pad - P)))

    kernel = functools.partial(
        _grid_interp_kernel, D=D, H=H, W=W, TP=TP, KT=KT,
        xmin=tuple(float(v) for v in xmin),
        xmax=tuple(float(v) for v in xmax))

    lat_t, weight_t, xloc_t = pl.pallas_call(
        kernel,
        out_shape=(jax.ShapeDtypeStruct((bs, C, P_pad * _NN), grid.dtype),
                   jax.ShapeDtypeStruct((bs, _NN, P_pad), jnp.float32),
                   jax.ShapeDtypeStruct((bs, 3, _NN, P_pad), jnp.float32)),
        grid_spec=pltpu.PrefetchScalarGridSpec(
            num_scalar_prefetch=0,
            grid=(bs, PT, NK),
            in_specs=[pl.BlockSpec((1, 3, TP), lambda b, pt, k: (b, 0, pt)),
                      pl.BlockSpec((1, C, KT), lambda b, pt, k: (b, 0, k))],
            out_specs=[pl.BlockSpec((1, C, _NN * TP), lambda b, pt, k: (b, 0, pt)),
                       pl.BlockSpec((1, _NN, TP), lambda b, pt, k: (b, 0, pt)),
                       pl.BlockSpec((1, 3, _NN, TP),
                                    lambda b, pt, k: (b, 0, 0, pt))],
            scratch_shapes=[pltpu.VMEM((C, _NN * TP), jnp.float32)]),
        compiler_params=pltpu.CompilerParams(
            dimension_semantics=("parallel", "parallel", "arbitrary"),
            vmem_limit_bytes=32 * 1024 * 1024),
    )(pts_t, grid_t)

    # Layout plumbing back to the PyTorch output shapes.
    lat = lat_t.reshape(bs, C, PT, _NN, TP)
    lat = jnp.transpose(lat, (0, 2, 4, 3, 1)).reshape(bs, P_pad, _NN, C)[:, :P]
    weight = jnp.transpose(weight_t, (0, 2, 1))[:, :P]            # (bs, P, 8)
    xloc = jnp.transpose(xloc_t, (0, 3, 2, 1))[:, :P]             # (bs, P, 8, 3)
    return lat, weight, xloc


def grid_interpolation_ref(grid, pts, xmin=(0.0, 0.0, 0.0), xmax=(1.0, 1.0, 1.0)):
    """Pure-JAX reference (mirrors the PyTorch module exactly)."""
    bs, D, H, W, C = grid.shape
    size = jnp.array([D, H, W], jnp.float32)
    cube = 1.0 / (size - 1.0)
    xminv = jnp.array(xmin, jnp.float32).reshape(1, 1, 3)
    xmaxv = jnp.array(xmax, jnp.float32).reshape(1, 1, 3)

    p = (pts - xminv) / (xmaxv - xminv)
    p = jnp.clip(p, 1e-6, 1.0 - 1e-6)
    ind0 = jnp.floor(p / cube)

    offs = jnp.asarray(_NEIGHBOR_OFFSETS, jnp.float32)                 # (8, 3)
    nbr = (ind0[:, :, None, :] + offs[None, None]).astype(jnp.int32)   # (bs,P,8,3)
    b_idx = jnp.arange(bs)[:, None, None]
    lat = grid[b_idx, nbr[..., 0], nbr[..., 1], nbr[..., 2], :]        # (bs,P,8,C)

    xyz0 = ind0 * cube
    xyz_nbr = xyz0[:, :, None, :] + offs * cube
    xyz_oppo = xyz0[:, :, None, :] + (1.0 - offs) * cube
    dxyz = jnp.abs(p[:, :, None, :] - xyz_oppo) / cube
    weight = dxyz[..., 0] * dxyz[..., 1] * dxyz[..., 2]
    xloc = (p[:, :, None, :] - xyz_nbr) / cube
    return lat, weight, xloc


if __name__ == "__main__":
    key = jax.random.PRNGKey(0)
    kg, kp, kg2, kp2 = jax.random.split(key, 4)

    # Test 1: small shapes matching the module (single P tile / single K chunk).
    bs, D, H, W, C = 2, 4, 4, 4, 32
    npoints = 8
    grid = jax.random.normal(kg, (bs, D, H, W, C), dtype=jnp.float32)
    pts = jax.random.uniform(kp, (bs, npoints, 3), dtype=jnp.float32)  # in [0,1)

    lat, weight, xloc = grid_interpolation(grid, pts)
    jax.block_until_ready((lat, weight, xloc))

    lat_r, weight_r, xloc_r = grid_interpolation_ref(grid, pts)
    assert lat.shape == (bs, npoints, 8, C)
    assert weight.shape == (bs, npoints, 8)
    assert xloc.shape == (bs, npoints, 8, 3)
    assert np.allclose(np.asarray(lat), np.asarray(lat_r), atol=1e-5)
    assert np.allclose(np.asarray(weight), np.asarray(weight_r), atol=1e-5)
    assert np.allclose(np.asarray(xloc), np.asarray(xloc_r), atol=1e-5)

    # Test 2: exercises multiple point tiles, multiple DHW chunks and padding.
    bs2, D2, H2, W2, C2 = 1, 6, 6, 6, 16
    np2 = 200
    grid2 = jax.random.normal(kg2, (bs2, D2, H2, W2, C2), dtype=jnp.float32)
    pts2 = jax.random.uniform(kp2, (bs2, np2, 3), dtype=jnp.float32)

    lat2, w2, x2 = grid_interpolation(grid2, pts2, tp=128, kt=128)
    jax.block_until_ready((lat2, w2, x2))

    lat2_r, w2_r, x2_r = grid_interpolation_ref(grid2, pts2)
    assert np.allclose(np.asarray(lat2), np.asarray(lat2_r), atol=1e-5)
    assert np.allclose(np.asarray(w2), np.asarray(w2_r), atol=1e-5)
    assert np.allclose(np.asarray(x2), np.asarray(x2_r), atol=1e-5)

    print("KERNEL_OK")
</pallas_src>

<mosaic_0001>
module attributes {stable_mosaic.version = 11 : i64} {
  func.func @_grid_interp_kernel(%arg0: i32, %arg1: i32, %arg2: i32, %arg3: memref<1x3x128xf32, #tpu.memory_space<vmem>>, %arg4: memref<1x32x128xf32, #tpu.memory_space<vmem>>, %arg5: memref<1x32x1024xf32, #tpu.memory_space<vmem>>, %arg6: memref<1x8x128xf32, #tpu.memory_space<vmem>>, %arg7: memref<1x3x8x128xf32, #tpu.memory_space<vmem>>, %arg8: memref<32x1024xf32, #tpu.memory_space<vmem>>) attributes {dimension_semantics = [#tpu.dimension_semantics<parallel>, #tpu.dimension_semantics<parallel>, #tpu.dimension_semantics<arbitrary>], iteration_bounds = array<i64: 2, 1, 1>, scalar_prefetch = 0 : i64, scratch_operands = 1 : i64, tpu.core_type = #tpu.core_type<tc>, window_params = [{transform_indices = @transform_0, window_bounds = array<i64: 1, 3, 128>}, {transform_indices = @transform_1, window_bounds = array<i64: 1, 32, 128>}, {transform_indices = @transform_2, window_bounds = array<i64: 1, 32, 1024>}, {transform_indices = @transform_3, window_bounds = array<i64: 1, 8, 128>}, {transform_indices = @transform_4, window_bounds = array<i64: 1, 3, 8, 128>}]} {
    %c0 = arith.constant 0 : index
    %c0_0 = arith.constant 0 : index
    %c0_1 = arith.constant 0 : index
    %0 = vector.load %arg3[%c0, %c0_0, %c0_1] : memref<1x3x128xf32, #tpu.memory_space<vmem>>, vector<1x3x128xf32>
    %1 = vector.shape_cast %0 : vector<1x3x128xf32> to vector<3x128xf32>
    %2 = tpu.iota {dimensions = array<i32: 0>} : vector<8x1xi32>
    %c0_i32 = arith.constant 0 : i32
    %3 = vector.broadcast %c0_i32 : i32 to vector<8x128xi32>
    %c2_i32 = arith.constant 2 : i32
    %4 = vector.broadcast %c2_i32 : i32 to vector<8x1xi32>
    %5 = arith.shrsi %2, %4 : vector<8x1xi32>
    %c1_i32 = arith.constant 1 : i32
    %6 = vector.broadcast %c1_i32 : i32 to vector<8x1xi32>
    %7 = arith.andi %5, %6 : vector<8x1xi32>
    %8 = arith.sitofp %7 : vector<8x1xi32> to vector<8x1xf32>
    %9 = vector.extract_strided_slice %1 {offsets = [0, 0], sizes = [1, 128], strides = [1, 1]} : vector<3x128xf32> to vector<1x128xf32>
    %cst = arith.constant 0.000000e+00 : f32
    %10 = vector.broadcast %cst : f32 to vector<1x128xf32>
    %11 = arith.subf %9, %10 : vector<1x128xf32>
    %cst_2 = arith.constant 1.000000e+00 : f32
    %12 = vector.broadcast %cst_2 : f32 to vector<1x128xf32>
    %13 = arith.divf %11, %12 : vector<1x128xf32>
    %cst_3 = arith.constant 9.99999997E-7 : f32
    %cst_4 = arith.constant 0.999998986 : f32
    %14 = vector.broadcast %cst_3 : f32 to vector<1x128xf32>
    %15 = arith.maximumf %14, %13 : vector<1x128xf32>
    %16 = vector.broadcast %cst_4 : f32 to vector<1x128xf32>
    %17 = arith.minimumf %16, %15 : vector<1x128xf32>
    %cst_5 = arith.constant 0.333333343 : f32
    %18 = vector.broadcast %cst_5 : f32 to vector<1x128xf32>
    %19 = arith.divf %17, %18 : vector<1x128xf32>
    %20 = math.floor %19 : vector<1x128xf32>
    %21 = vector.broadcast %20 : vector<1x128xf32> to vector<8x128xf32>
    %22 = vector.broadcast %8 : vector<8x1xf32> to vector<8x128xf32>
    %23 = arith.addf %21, %22 : vector<8x128xf32>
    %24 = arith.fptosi %23 : vector<8x128xf32> to vector<8x128xi32>
    %c16_i32 = arith.constant 16 : i32
    %25 = vector.broadcast %c16_i32 : i32 to vector<8x128xi32>
    %26 = arith.muli %24, %25 : vector<8x128xi32>
    %27 = arith.addi %3, %26 : vector<8x128xi32>
    %c1_i32_6 = arith.constant 1 : i32
    %28 = vector.broadcast %c1_i32_6 : i32 to vector<8x1xi32>
    %29 = arith.shrsi %2, %28 : vector<8x1xi32>
    %c1_i32_7 = arith.constant 1 : i32
    %30 = vector.broadcast %c1_i32_7 : i32 to vector<8x1xi32>
    %31 = arith.andi %29, %30 : vector<8x1xi32>
    %32 = arith.sitofp %31 : vector<8x1xi32> to vector<8x1xf32>
    %33 = vector.extract_strided_slice %1 {offsets = [1, 0], sizes = [1, 128], strides = [1, 1]} : vector<3x128xf32> to vector<1x128xf32>
    %cst_8 = arith.constant 0.000000e+00 : f32
    %34 = vector.broadcast %cst_8 : f32 to vector<1x128xf32>
    %35 = arith.subf %33, %34 : vector<1x128xf32>
    %cst_9 = arith.constant 1.000000e+00 : f32
    %36 = vector.broadcast %cst_9 : f32 to vector<1x128xf32>
    %37 = arith.divf %35, %36 : vector<1x128xf32>
    %cst_10 = arith.constant 9.99999997E-7 : f32
    %cst_11 = arith.constant 0.999998986 : f32
    %38 = vector.broadcast %cst_10 : f32 to vector<1x128xf32>
    %39 = arith.maximumf %38, %37 : vector<1x128xf32>
    %40 = vector.broadcast %cst_11 : f32 to vector<1x128xf32>
    %41 = arith.minimumf %40, %39 : vector<1x128xf32>
    %cst_12 = arith.constant 0.333333343 : f32
    %42 = vector.broadcast %cst_12 : f32 to vector<1x128xf32>
    %43 = arith.divf %41, %42 : vector<1x128xf32>
    %44 = math.floor %43 : vector<1x128xf32>
    %45 = vector.broadcast %44 : vector<1x128xf32> to vector<8x128xf32>
    %46 = vector.broadcast %32 : vector<8x1xf32> to vector<8x128xf32>
    %47 = arith.addf %45, %46 : vector<8x128xf32>
    %48 = arith.fptosi %47 : vector<8x128xf32> to vector<8x128xi32>
    %c4_i32 = arith.constant 4 : i32
    %49 = vector.broadcast %c4_i32 : i32 to vector<8x128xi32>
    %50 = arith.muli %48, %49 : vector<8x128xi32>
    %51 = arith.addi %27, %50 : vector<8x128xi32>
    %c0_i32_13 = arith.constant 0 : i32
    %52 = vector.broadcast %c0_i32_13 : i32 to vector<8x1xi32>
    %53 = arith.shrsi %2, %52 : vector<8x1xi32>
    %c1_i32_14 = arith.constant 1 : i32
    %54 = vector.broadcast %c1_i32_14 : i32 to vector<8x1xi32>
    %55 = arith.andi %53, %54 : vector<8x1xi32>
    %56 = arith.sitofp %55 : vector<8x1xi32> to vector<8x1xf32>
    %57 = vector.extract_strided_slice %1 {offsets = [2, 0], sizes = [1, 128], strides = [1, 1]} : vector<3x128xf32> to vector<1x128xf32>
    %cst_15 = arith.constant 0.000000e+00 : f32
    %58 = vector.broadcast %cst_15 : f32 to vector<1x128xf32>
    %59 = arith.subf %57, %58 : vector<1x128xf32>
    %cst_16 = arith.constant 1.000000e+00 : f32
    %60 = vector.broadcast %cst_16 : f32 to vector<1x128xf32>
    %61 = arith.divf %59, %60 : vector<1x128xf32>
    %cst_17 = arith.constant 9.99999997E-7 : f32
    %cst_18 = arith.constant 0.999998986 : f32
    %62 = vector.broadcast %cst_17 : f32 to vector<1x128xf32>
    %63 = arith.maximumf %62, %61 : vector<1x128xf32>
    %64 = vector.broadcast %cst_18 : f32 to vector<1x128xf32>
    %65 = arith.minimumf %64, %63 : vector<1x128xf32>
    %cst_19 = arith.constant 0.333333343 : f32
    %66 = vector.broadcast %cst_19 : f32 to vector<1x128xf32>
    %67 = arith.divf %65, %66 : vector<1x128xf32>
    %68 = math.floor %67 : vector<1x128xf32>
    %69 = vector.broadcast %68 : vector<1x128xf32> to vector<8x128xf32>
    %70 = vector.broadcast %56 : vector<8x1xf32> to vector<8x128xf32>
    %71 = arith.addf %69, %70 : vector<8x128xf32>
    %72 = arith.fptosi %71 : vector<8x128xf32> to vector<8x128xi32>
    %c1_i32_20 = arith.constant 1 : i32
    %73 = vector.broadcast %c1_i32_20 : i32 to vector<8x128xi32>
    %74 = arith.muli %72, %73 : vector<8x128xi32>
    %75 = arith.addi %51, %74 : vector<8x128xi32>
    %c0_i32_21 = arith.constant 0 : i32
    %76 = arith.cmpi eq, %arg2, %c0_i32_21 : i32
    %77 = arith.extui %76 : i1 to i32
    %c0_i32_22 = arith.constant 0 : i32
    %78 = arith.cmpi ne, %77, %c0_i32_22 : i32
    scf.if %78 {
      %cst_61 = arith.constant 0.000000e+00 : f32
      %160 = vector.broadcast %cst_61 : f32 to vector<32x1024xf32>
      %c0_62 = arith.constant 0 : index
      %c0_63 = arith.constant 0 : index
      %161 = vector.load %arg8[%c0_62, %c0_63] : memref<32x1024xf32, #tpu.memory_space<vmem>>, vector<32x1024xf32>
      tpu.vector_store %arg8[%c0_62, %c0_63], %160 {strides = array<i32>} : memref<32x1024xf32, #tpu.memory_space<vmem>>, vector<32x1024xf32>,
      %cst_64 = arith.constant 1.000000e+00 : f32
      %162 = vector.broadcast %cst_64 : f32 to vector<8x128xf32>
      %cst_65 = arith.constant 0.333333343 : f32
      %163 = vector.broadcast %cst_65 : f32 to vector<1x128xf32>
      %164 = arith.mulf %20, %163 : vector<1x128xf32>
      %cst_66 = arith.constant 0.333333343 : f32
      %165 = vector.broadcast %cst_66 : f32 to vector<8x1xf32>
      %166 = arith.mulf %8, %165 : vector<8x1xf32>
      %167 = vector.broadcast %164 : vector<1x128xf32> to vector<8x128xf32>
      %168 = vector.broadcast %166 : vector<8x1xf32> to vector<8x128xf32>
      %169 = arith.addf %167, %168 : vector<8x128xf32>
      %cst_67 = arith.constant 1.000000e+00 : f32
      %170 = vector.broadcast %cst_67 : f32 to vector<8x1xf32>
      %171 = arith.subf %170, %8 : vector<8x1xf32>
      %cst_68 = arith.constant 0.333333343 : f32
      %172 = vector.broadcast %cst_68 : f32 to vector<8x1xf32>
      %173 = arith.mulf %171, %172 : vector<8x1xf32>
      %174 = vector.broadcast %164 : vector<1x128xf32> to vector<8x128xf32>
      %175 = vector.broadcast %173 : vector<8x1xf32> to vector<8x128xf32>
      %176 = arith.addf %174, %175 : vector<8x128xf32>
      %177 = vector.broadcast %17 : vector<1x128xf32> to vector<8x128xf32>
      %178 = arith.subf %177, %176 : vector<8x128xf32>
      %179 = math.absf %178 : vector<8x128xf32>
      %cst_69 = arith.constant 0.333333343 : f32
      %180 = vector.broadcast %cst_69 : f32 to vector<8x128xf32>
      %181 = arith.divf %179, %180 : vector<8x128xf32>
      %182 = arith.mulf %162, %181 : vector<8x128xf32>
      %183 = vector.broadcast %17 : vector<1x128xf32> to vector<8x128xf32>
      %184 = arith.subf %183, %169 : vector<8x128xf32>
      %cst_70 = arith.constant 0.333333343 : f32
      %185 = vector.broadcast %cst_70 : f32 to vector<8x128xf32>
      %186 = arith.divf %184, %185 : vector<8x128xf32>
      %c0_71 = arith.constant 0 : index
      %c0_72 = arith.constant 0 : index
      %c0_73 = arith.constant 0 : index
      %c0_74 = arith.constant 0 : index
      %187 = vector.load %arg7[%c0_71, %c0_72, %c0_73, %c0_74] : memref<1x3x8x128xf32, #tpu.memory_space<vmem>>, vector<1x1x8x128xf32>
      %188 = vector.shape_cast %187 : vector<1x1x8x128xf32> to vector<8x128xf32>
      %189 = vector.shape_cast %186 : vector<8x128xf32> to vector<1x1x8x128xf32>
      tpu.vector_store %arg7[%c0_71, %c0_72, %c0_73, %c0_74], %189 {strides = array<i32>} : memref<1x3x8x128xf32, #tpu.memory_space<vmem>>, vector<1x1x8x128xf32>,
      %cst_75 = arith.constant 0.333333343 : f32
      %190 = vector.broadcast %cst_75 : f32 to vector<1x128xf32>
      %191 = arith.mulf %44, %190 : vector<1x128xf32>
      %cst_76 = arith.constant 0.333333343 : f32
      %192 = vector.broadcast %cst_76 : f32 to vector<8x1xf32>
      %193 = arith.mulf %32, %192 : vector<8x1xf32>
      %194 = vector.broadcast %191 : vector<1x128xf32> to vector<8x128xf32>
      %195 = vector.broadcast %193 : vector<8x1xf32> to vector<8x128xf32>
      %196 = arith.addf %194, %195 : vector<8x128xf32>
      %cst_77 = arith.constant 1.000000e+00 : f32
      %197 = vector.broadcast %cst_77 : f32 to vector<8x1xf32>
      %198 = arith.subf %197, %32 : vector<8x1xf32>
      %cst_78 = arith.constant 0.333333343 : f32
      %199 = vector.broadcast %cst_78 : f32 to vector<8x1xf32>
      %200 = arith.mulf %198, %199 : vector<8x1xf32>
      %201 = vector.broadcast %191 : vector<1x128xf32> to vector<8x128xf32>
      %202 = vector.broadcast %200 : vector<8x1xf32> to vector<8x128xf32>
      %203 = arith.addf %201, %202 : vector<8x128xf32>
      %204 = vector.broadcast %41 : vector<1x128xf32> to vector<8x128xf32>
      %205 = arith.subf %204, %203 : vector<8x128xf32>
      %206 = math.absf %205 : vector<8x128xf32>
      %cst_79 = arith.constant 0.333333343 : f32
      %207 = vector.broadcast %cst_79 : f32 to vector<8x128xf32>
      %208 = arith.divf %206, %207 : vector<8x128xf32>
      %209 = arith.mulf %182, %208 : vector<8x128xf32>
      %210 = vector.broadcast %41 : vector<1x128xf32> to vector<8x128xf32>
      %211 = arith.subf %210, %196 : vector<8x128xf32>
      %cst_80 = arith.constant 0.333333343 : f32
      %212 = vector.broadcast %cst_80 : f32 to vector<8x128xf32>
      %213 = arith.divf %211, %212 : vector<8x128xf32>
      %c0_81 = arith.constant 0 : index
      %c1 = arith.constant 1 : index
      %c0_82 = arith.constant 0 : index
      %c0_83 = arith.constant 0 : index
      %214 = vector.load %arg7[%c0_81, %c1, %c0_82, %c0_83] : memref<1x3x8x128xf32, #tpu.memory_space<vmem>>, vector<1x1x8x128xf32>
      %215 = vector.shape_cast %214 : vector<1x1x8x128xf32> to vector<8x128xf32>
      %216 = vector.shape_cast %213 : vector<8x128xf32> to vector<1x1x8x128xf32>
      tpu.vector_store %arg7[%c0_81, %c1, %c0_82, %c0_83], %216 {strides = array<i32>} : memref<1x3x8x128xf32, #tpu.memory_space<vmem>>, vector<1x1x8x128xf32>,
      %cst_84 = arith.constant 0.333333343 : f32
      %217 = vector.broadcast %cst_84 : f32 to vector<1x128xf32>
      %218 = arith.mulf %68, %217 : vector<1x128xf32>
      %cst_85 = arith.constant 0.333333343 : f32
      %219 = vector.broadcast %cst_85 : f32 to vector<8x1xf32>
      %220 = arith.mulf %56, %219 : vector<8x1xf32>
      %221 = vector.broadcast %218 : vector<1x128xf32> to vector<8x128xf32>
      %222 = vector.broadcast %220 : vector<8x1xf32> to vector<8x128xf32>
      %223 = arith.addf %221, %222 : vector<8x128xf32>
      %cst_86 = arith.constant 1.000000e+00 : f32
      %224 = vector.broadcast %cst_86 : f32 to vector<8x1xf32>
      %225 = arith.subf %224, %56 : vector<8x1xf32>
      %cst_87 = arith.constant 0.333333343 : f32
      %226 = vector.broadcast %cst_87 : f32 to vector<8x1xf32>
      %227 = arith.mulf %225, %226 : vector<8x1xf32>
      %228 = vector.broadcast %218 : vector<1x128xf32> to vector<8x128xf32>
      %229 = vector.broadcast %227 : vector<8x1xf32> to vector<8x128xf32>
      %230 = arith.addf %228, %229 : vector<8x128xf32>
      %231 = vector.broadcast %65 : vector<1x128xf32> to vector<8x128xf32>
      %232 = arith.subf %231, %230 : vector<8x128xf32>
      %233 = math.absf %232 : vector<8x128xf32>
      %cst_88 = arith.constant 0.333333343 : f32
      %234 = vector.broadcast %cst_88 : f32 to vector<8x128xf32>
      %235 = arith.divf %233, %234 : vector<8x128xf32>
      %236 = arith.mulf %209, %235 : vector<8x128xf32>
      %237 = vector.broadcast %65 : vector<1x128xf32> to vector<8x128xf32>
      %238 = arith.subf %237, %223 : vector<8x128xf32>
      %cst_89 = arith.constant 0.333333343 : f32
      %239 = vector.broadcast %cst_89 : f32 to vector<8x128xf32>
      %240 = arith.divf %238, %239 : vector<8x128xf32>
      %c0_90 = arith.constant 0 : index
      %c2 = arith.constant 2 : index
      %c0_91 = arith.constant 0 : index
      %c0_92 = arith.constant 0 : index
      %241 = vector.load %arg7[%c0_90, %c2, %c0_91, %c0_92] : memref<1x3x8x128xf32, #tpu.memory_space<vmem>>, vector<1x1x8x128xf32>
      %242 = vector.shape_cast %241 : vector<1x1x8x128xf32> to vector<8x128xf32>
      %243 = vector.shape_cast %240 : vector<8x128xf32> to vector<1x1x8x128xf32>
      tpu.vector_store %arg7[%c0_90, %c2, %c0_91, %c0_92], %243 {strides = array<i32>} : memref<1x3x8x128xf32, #tpu.memory_space<vmem>>, vector<1x1x8x128xf32>,
      %c0_93 = arith.constant 0 : index
      %c0_94 = arith.constant 0 : index
      %c0_95 = arith.constant 0 : index
      %244 = vector.load %arg6[%c0_93, %c0_94, %c0_95] : memref<1x8x128xf32, #tpu.memory_space<vmem>>, vector<1x8x128xf32>
      %245 = vector.shape_cast %244 : vector<1x8x128xf32> to vector<8x128xf32>
      %246 = vector.shape_cast %236 : vector<8x128xf32> to vector<1x8x128xf32>
      tpu.vector_store %arg6[%c0_93, %c0_94, %c0_95], %246 {strides = array<i32>} : memref<1x8x128xf32, #tpu.memory_space<vmem>>, vector<1x8x128xf32>,
    } else {
    }
    %c0_23 = arith.constant 0 : index
    %c0_24 = arith.constant 0 : index
    %c0_25 = arith.constant 0 : index
    %79 = vector.load %arg4[%c0_23, %c0_24, %c0_25] : memref<1x32x128xf32, #tpu.memory_space<vmem>>, vector<1x32x128xf32>
    %80 = vector.shape_cast %79 : vector<1x32x128xf32> to vector<32x128xf32>
    %c128_i32 = arith.constant 128 : i32
    %81 = arith.muli %arg2, %c128_i32 : i32
    %82 = vector.broadcast %81 : i32 to vector<8x128xi32>
    %83 = arith.subi %75, %82 : vector<8x128xi32>
    %84 = tpu.iota {dimensions = array<i32: 0>} : vector<128x128xi32>
    %85 = vector.extract_strided_slice %83 {offsets = [0, 0], sizes = [1, 128], strides = [1, 1]} : vector<8x128xi32> to vector<1x128xi32>
    %86 = vector.broadcast %85 : vector<1x128xi32> to vector<128x128xi32>
    %87 = arith.cmpi eq, %84, %86 : vector<128x128xi32>
    %88 = arith.extui %87 : vector<128x128xi1> to vector<128x128xi32>
    %89 = arith.sitofp %88 : vector<128x128xi32> to vector<128x128xf32>
    %c0_26 = arith.constant 0 : index
    %c0_27 = arith.constant 0 : index
    %90 = vector.load %arg8[%c0_26, %c0_27] : memref<32x1024xf32, #tpu.memory_space<vmem>>, vector<32x128xf32>
    %cst_28 = arith.constant dense<0.000000e+00> : vector<32x128xf32>
    %91 = tpu.matmul %80, %89, %cst_28 {dimension_numbers = #tpu.dot_dimension_numbers<[1], [0], [0], [1], [0, 0, 1, 1], [], []>} : vector<32x128xf32>, vector<128x128xf32>, vector<32x128xf32> -> vector<32x128xf32>
    %92 = arith.addf %90, %91 : vector<32x128xf32>
    %c0_29 = arith.constant 0 : index
    %c0_30 = arith.constant 0 : index
    %93 = vector.load %arg8[%c0_29, %c0_30] : memref<32x1024xf32, #tpu.memory_space<vmem>>, vector<32x128xf32>
    tpu.vector_store %arg8[%c0_29, %c0_30], %92 {strides = array<i32>} : memref<32x1024xf32, #tpu.memory_space<vmem>>, vector<32x128xf32>,
    %94 = vector.extract_strided_slice %83 {offsets = [1, 0], sizes = [1, 128], strides = [1, 1]} : vector<8x128xi32> to vector<1x128xi32>
    %95 = vector.broadcast %94 : vector<1x128xi32> to vector<128x128xi32>
    %96 = arith.cmpi eq, %84, %95 : vector<128x128xi32>
    %97 = arith.extui %96 : vector<128x128xi1> to vector<128x128xi32>
    %98 = arith.sitofp %97 : vector<128x128xi32> to vector<128x128xf32>
    %c0_31 = arith.constant 0 : index
    %c128 = arith.constant 128 : index
    %99 = vector.load %arg8[%c0_31, %c128] : memref<32x1024xf32, #tpu.memory_space<vmem>>, vector<32x128xf32>
    %cst_32 = arith.constant dense<0.000000e+00> : vector<32x128xf32>
    %100 = tpu.matmul %80, %98, %cst_32 {dimension_numbers = #tpu.dot_dimension_numbers<[1], [0], [0], [1], [0, 0, 1, 1], [], []>} : vector<32x128xf32>, vector<128x128xf32>, vector<32x128xf32> -> vector<32x128xf32>
    %101 = arith.addf %99, %100 : vector<32x128xf32>
    %c0_33 = arith.constant 0 : index
    %c128_34 = arith.constant 128 : index
    %102 = vector.load %arg8[%c0_33, %c128_34] : memref<32x1024xf32, #tpu.memory_space<vmem>>, vector<32x128xf32>
    tpu.vector_store %arg8[%c0_33, %c128_34], %101 {strides = array<i32>} : memref<32x1024xf32, #tpu.memory_space<vmem>>, vector<32x128xf32>,
    %103 = vector.extract_strided_slice %83 {offsets = [2, 0], sizes = [1, 128], strides = [1, 1]} : vector<8x128xi32> to vector<1x128xi32>
    %104 = vector.broadcast %103 : vector<1x128xi32> to vector<128x128xi32>
    %105 = arith.cmpi eq, %84, %104 : vector<128x128xi32>
    %106 = arith.extui %105 : vector<128x128xi1> to vector<128x128xi32>
    %107 = arith.sitofp %106 : vector<128x128xi32> to vector<128x128xf32>
    %c0_35 = arith.constant 0 : index
    %c256 = arith.constant 256 : index
    %108 = vector.load %arg8[%c0_35, %c256] : memref<32x1024xf32, #tpu.memory_space<vmem>>, vector<32x128xf32>
    %cst_36 = arith.constant dense<0.000000e+00> : vector<32x128xf32>
    %109 = tpu.matmul %80, %107, %cst_36 {dimension_numbers = #tpu.dot_dimension_numbers<[1], [0], [0], [1], [0, 0, 1, 1], [], []>} : vector<32x128xf32>, vector<128x128xf32>, vector<32x128xf32> -> vector<32x128xf32>
    %110 = arith.addf %108, %109 : vector<32x128xf32>
    %c0_37 = arith.constant 0 : index
    %c256_38 = arith.constant 256 : index
    %111 = vector.load %arg8[%c0_37, %c256_38] : memref<32x1024xf32, #tpu.memory_space<vmem>>, vector<32x128xf32>
    tpu.vector_store %arg8[%c0_37, %c256_38], %110 {strides = array<i32>} : memref<32x1024xf32, #tpu.memory_space<vmem>>, vector<32x128xf32>,
    %112 = vector.extract_strided_slice %83 {offsets = [3, 0], sizes = [1, 128], strides = [1, 1]} : vector<8x128xi32> to vector<1x128xi32>
    %113 = vector.broadcast %112 : vector<1x128xi32> to vector<128x128xi32>
    %114 = arith.cmpi eq, %84, %113 : vector<128x128xi32>
    %115 = arith.extui %114 : vector<128x128xi1> to vector<128x128xi32>
    %116 = arith.sitofp %115 : vector<128x128xi32> to vector<128x128xf32>
    %c0_39 = arith.constant 0 : index
    %c384 = arith.constant 384 : index
    %117 = vector.load %arg8[%c0_39, %c384] : memref<32x1024xf32, #tpu.memory_space<vmem>>, vector<32x128xf32>
    %cst_40 = arith.constant dense<0.000000e+00> : vector<32x128xf32>
    %118 = tpu.matmul %80, %116, %cst_40 {dimension_numbers = #tpu.dot_dimension_numbers<[1], [0], [0], [1], [0, 0, 1, 1], [], []>} : vector<32x128xf32>, vector<128x128xf32>, vector<32x128xf32> -> vector<32x128xf32>
    %119 = arith.addf %117, %118 : vector<32x128xf32>
    %c0_41 = arith.constant 0 : index
    %c384_42 = arith.constant 384 : index
    %120 = vector.load %arg8[%c0_41, %c384_42] : memref<32x1024xf32, #tpu.memory_space<vmem>>, vector<32x128xf32>
    tpu.vector_store %arg8[%c0_41, %c384_42], %119 {strides = array<i32>} : memref<32x1024xf32, #tpu.memory_space<vmem>>, vector<32x128xf32>,
    %121 = vector.extract_strided_slice %83 {offsets = [4, 0], sizes = [1, 128], strides = [1, 1]} : vector<8x128xi32> to vector<1x128xi32>
    %122 = vector.broadcast %121 : vector<1x128xi32> to vector<128x128xi32>
    %123 = arith.cmpi eq, %84, %122 : vector<128x128xi32>
    %124 = arith.extui %123 : vector<128x128xi1> to vector<128x128xi32>
    %125 = arith.sitofp %124 : vector<128x128xi32> to vector<128x128xf32>
    %c0_43 = arith.constant 0 : index
    %c512 = arith.constant 512 : index
    %126 = vector.load %arg8[%c0_43, %c512] : memref<32x1024xf32, #tpu.memory_space<vmem>>, vector<32x128xf32>
    %cst_44 = arith.constant dense<0.000000e+00> : vector<32x128xf32>
    %127 = tpu.matmul %80, %125, %cst_44 {dimension_numbers = #tpu.dot_dimension_numbers<[1], [0], [0], [1], [0, 0, 1, 1], [], []>} : vector<32x128xf32>, vector<128x128xf32>, vector<32x128xf32> -> vector<32x128xf32>
    %128 = arith.addf %126, %127 : vector<32x128xf32>
    %c0_45 = arith.constant 0 : index
    %c512_46 = arith.constant 512 : index
    %129 = vector.load %arg8[%c0_45, %c512_46] : memref<32x1024xf32, #tpu.memory_space<vmem>>, vector<32x128xf32>
    tpu.vector_store %arg8[%c0_45, %c512_46], %128 {strides = array<i32>} : memref<32x1024xf32, #tpu.memory_space<vmem>>, vector<32x128xf32>,
    %130 = vector.extract_strided_slice %83 {offsets = [5, 0], sizes = [1, 128], strides = [1, 1]} : vector<8x128xi32> to vector<1x128xi32>
    %131 = vector.broadcast %130 : vector<1x128xi32> to vector<128x128xi32>
    %132 = arith.cmpi eq, %84, %131 : vector<128x128xi32>
    %133 = arith.extui %132 : vector<128x128xi1> to vector<128x128xi32>
    %134 = arith.sitofp %133 : vector<128x128xi32> to vector<128x128xf32>
    %c0_47 = arith.constant 0 : index
    %c640 = arith.constant 640 : index
    %135 = vector.load %arg8[%c0_47, %c640] : memref<32x1024xf32, #tpu.memory_space<vmem>>, vector<32x128xf32>
    %cst_48 = arith.constant dense<0.000000e+00> : vector<32x128xf32>
    %136 = tpu.matmul %80, %134, %cst_48 {dimension_numbers = #tpu.dot_dimension_numbers<[1], [0], [0], [1], [0, 0, 1, 1], [], []>} : vector<32x128xf32>, vector<128x128xf32>, vector<32x128xf32> -> vector<32x128xf32>
    %137 = arith.addf %135, %136 : vector<32x128xf32>
    %c0_49 = arith.constant 0 : index
    %c640_50 = arith.constant 640 : index
    %138 = vector.load %arg8[%c0_49, %c640_50] : memref<32x1024xf32, #tpu.memory_space<vmem>>, vector<32x128xf32>
    tpu.vector_store %arg8[%c0_49, %c640_50], %137 {strides = array<i32>} : memref<32x1024xf32, #tpu.memory_space<vmem>>, vector<32x128xf32>,
    %139 = vector.extract_strided_slice %83 {offsets = [6, 0], sizes = [1, 128], strides = [1, 1]} : vector<8x128xi32> to vector<1x128xi32>
    %140 = vector.broadcast %139 : vector<1x128xi32> to vector<128x128xi32>
    %141 = arith.cmpi eq, %84, %140 : vector<128x128xi32>
    %142 = arith.extui %141 : vector<128x128xi1> to vector<128x128xi32>
    %143 = arith.sitofp %142 : vector<128x128xi32> to vector<128x128xf32>
    %c0_51 = arith.constant 0 : index
    %c768 = arith.constant 768 : index
    %144 = vector.load %arg8[%c0_51, %c768] : memref<32x1024xf32, #tpu.memory_space<vmem>>, vector<32x128xf32>
    %cst_52 = arith.constant dense<0.000000e+00> : vector<32x128xf32>
    %145 = tpu.matmul %80, %143, %cst_52 {dimension_numbers = #tpu.dot_dimension_numbers<[1], [0], [0], [1], [0, 0, 1, 1], [], []>} : vector<32x128xf32>, vector<128x128xf32>, vector<32x128xf32> -> vector<32x128xf32>
    %146 = arith.addf %144, %145 : vector<32x128xf32>
    %c0_53 = arith.constant 0 : index
    %c768_54 = arith.constant 768 : index
    %147 = vector.load %arg8[%c0_53, %c768_54] : memref<32x1024xf32, #tpu.memory_space<vmem>>, vector<32x128xf32>
    tpu.vector_store %arg8[%c0_53, %c768_54], %146 {strides = array<i32>} : memref<32x1024xf32, #tpu.memory_space<vmem>>, vector<32x128xf32>,
    %148 = vector.extract_strided_slice %83 {offsets = [7, 0], sizes = [1, 128], strides = [1, 1]} : vector<8x128xi32> to vector<1x128xi32>
    %149 = vector.broadcast %148 : vector<1x128xi32> to vector<128x128xi32>
    %150 = arith.cmpi eq, %84, %149 : vector<128x128xi32>
    %151 = arith.extui %150 : vector<128x128xi1> to vector<128x128xi32>
    %152 = arith.sitofp %151 : vector<128x128xi32> to vector<128x128xf32>
    %c0_55 = arith.constant 0 : index
    %c896 = arith.constant 896 : index
    %153 = vector.load %arg8[%c0_55, %c896] : memref<32x1024xf32, #tpu.memory_space<vmem>>, vector<32x128xf32>
    %cst_56 = arith.constant dense<0.000000e+00> : vector<32x128xf32>
    %154 = tpu.matmul %80, %152, %cst_56 {dimension_numbers = #tpu.dot_dimension_numbers<[1], [0], [0], [1], [0, 0, 1, 1], [], []>} : vector<32x128xf32>, vector<128x128xf32>, vector<32x128xf32> -> vector<32x128xf32>
    %155 = arith.addf %153, %154 : vector<32x128xf32>
    %c0_57 = arith.constant 0 : index
    %c896_58 = arith.constant 896 : index
    %156 = vector.load %arg8[%c0_57, %c896_58] : memref<32x1024xf32, #tpu.memory_space<vmem>>, vector<32x128xf32>
    tpu.vector_store %arg8[%c0_57, %c896_58], %155 {strides = array<i32>} : memref<32x1024xf32, #tpu.memory_space<vmem>>, vector<32x128xf32>,
    %c0_i32_59 = arith.constant 0 : i32
    %157 = arith.cmpi eq, %arg2, %c0_i32_59 : i32
    %158 = arith.extui %157 : i1 to i32
    %c0_i32_60 = arith.constant 0 : i32
    %159 = arith.cmpi ne, %158, %c0_i32_60 : i32
    scf.if %159 {
      %c0_61 = arith.constant 0 : index
      %c0_62 = arith.constant 0 : index
      %160 = vector.load %arg8[%c0_61, %c0_62] : memref<32x1024xf32, #tpu.memory_space<vmem>>, vector<32x1024xf32>
      %c0_63 = arith.constant 0 : index
      %c0_64 = arith.constant 0 : index
      %c0_65 = arith.constant 0 : index
      %161 = vector.load %arg5[%c0_63, %c0_64, %c0_65] : memref<1x32x1024xf32, #tpu.memory_space<vmem>>, vector<1x32x1024xf32>
      %162 = vector.shape_cast %161 : vector<1x32x1024xf32> to vector<32x1024xf32>
      %163 = vector.shape_cast %160 : vector<32x1024xf32> to vector<1x32x1024xf32>
      tpu.vector_store %arg5[%c0_63, %c0_64, %c0_65], %163 {strides = array<i32>} : memref<1x32x1024xf32, #tpu.memory_space<vmem>>, vector<1x32x1024xf32>,
    } else {
    }
    return
  }
  func.func @transform_0(%arg0: i32, %arg1: i32, %arg2: i32) -> (i32, i32, i32) {
    %c0_i32 = arith.constant 0 : i32
    %c0_i32_0 = arith.constant 0 : i32
    return %arg0, %c0_i32, %arg1 : i32, i32, i32
  }
  func.func @transform_1(%arg0: i32, %arg1: i32, %arg2: i32) -> (i32, i32, i32) {
    %c0_i32 = arith.constant 0 : i32
    %c0_i32_0 = arith.constant 0 : i32
    return %arg0, %c0_i32, %arg2 : i32, i32, i32
  }
  func.func @transform_2(%arg0: i32, %arg1: i32, %arg2: i32) -> (i32, i32, i32) {
    %c0_i32 = arith.constant 0 : i32
    %c0_i32_0 = arith.constant 0 : i32
    return %arg0, %c0_i32, %arg1 : i32, i32, i32
  }
  func.func @transform_3(%arg0: i32, %arg1: i32, %arg2: i32) -> (i32, i32, i32) {
    %c0_i32 = arith.constant 0 : i32
    %c0_i32_0 = arith.constant 0 : i32
    return %arg0, %c0_i32, %arg1 : i32, i32, i32
  }
  func.func @transform_4(%arg0: i32, %arg1: i32, %arg2: i32) -> (i32, i32, i32, i32) {
    %c0_i32 = arith.constant 0 : i32
    %c0_i32_0 = arith.constant 0 : i32
    %c0_i32_1 = arith.constant 0 : i32
    return %arg0, %c0_i32, %c0_i32_0, %arg1 : i32, i32, i32, i32
  }
}

</mosaic_0001>

<llo_original>
// kernel: tpu_custom_call.1
$region0: #{tpu_custom_call.1}
  #allocation0 [shape = 'u32[]', space=smem, size = 0x4, offset = 0x4, fixed_abs, tag = 'smem constant byte address 0x4 - core index']
  #allocation1 [shape = 'u32[144,128]{1,0:T(1,128)}', space=vmem, size = 0x12000, scoped, tag = 'internal scratch']
  #allocation2 [shape = 'f32[32,1024]{1,0:T(8,128)}', space=vmem, size = 0x20000, scoped, tag = 'scratch operand']
  %s0 = inlined_call_operand.vmem [shape: f32[2,3,128], index: 0, kind: input, shape index: {}]
  %s1 = inlined_call_operand.hbm [shape: f32[2,32,128], index: 1, kind: input, shape index: {}]
  %s2 = inlined_call_operand.hbm [shape: f32[2,32,1024], index: 2, kind: output, shape index: {0}]
  %s3 = inlined_call_operand.hbm [shape: f32[2,8,128], index: 3, kind: output, shape index: {1}]
  %s4 = inlined_call_operand.hbm [shape: f32[2,3,8,128], index: 4, kind: output, shape index: {2}]
  %5 = xla_tuple %s2, %s3, %s4
  %s6 = sld [smem:[#allocation0]]
  $region69: #{tpu_custom_call.1} parent=0
    _
  %s8 = ssub.s32 1, %s6
  %s9 = scalar_select 0, %s8, %s6
  $region1: #{tpu_custom_call.1} parent=0
    #allocation3 [shape = 'u8[32768]{0}', space=vmem, size = 0x8000, scoped, tag = 'input window, operand 1']
    #allocation4 [shape = 's32[2]{0}', space=sflag, size = 0x8, scoped, tag = 'scoped memory for tpu_custom_call.1']
    #allocation5 [shape = 's32[2]{0}', space=sflag, size = 0x8, scoped, tag = 'scoped memory for tpu_custom_call.1']
    #allocation6 [shape = 'u8[262144]{0}', space=vmem, size = 0x40000, scoped, tag = 'output window, operand 0']
    #allocation7 [shape = 'u8[8192]{0}', space=vmem, size = 0x2000, scoped, tag = 'output window, operand 1']
    #allocation8 [shape = 's32[2]{0}', space=sflag, size = 0x8, scoped, tag = 'scoped memory for tpu_custom_call.1']
    #allocation9 [shape = 'u8[24576]{0}', space=vmem, size = 0x6000, scoped, tag = 'output window, operand 2']
    %10 = vsyncpa [#allocation4], 0
    %s11 = scalar_lea.sflag [#allocation4], 1
    %12 = vsyncpa %s11, 0
    %13 = vsyncpa [#allocation5], 0
    %s14 = scalar_lea.sflag [#allocation5], 1
    %15 = vsyncpa %s14, 0
    %16 = vsyncpa [#allocation8], 0
    %s17 = scalar_lea.sflag [#allocation8], 1
    %18 = vsyncpa %s17, 0
    loop: start=0, step=1, limit=4
    $region2: #{tpu_custom_call.1} parent=1 // loop_pre_header
      _
    $region3: #{tpu_custom_call.1} parent=1 // loop_header
      %s20 = sphi 0, %s24
      %p21 = scmp.ge.s32.totalorder %s20, 4
      %s27 = sphi 0, %s46
      %s28 = sphi 0, %s42
      %s29 = sphi 0, %s38
      %s30 = sphi 0, %s27
      %s31 = sphi 0, %s28
      %s32 = sphi 0, %s29
      %s33 = sphi 0, %s30
      %s34 = sphi 0, %s31
      %s35 = sphi 0, %s32
      %s51 = sphi 0, %s53
      %s54 = sphi 0, %s51
      %s55 = sphi 0, %s54
      %s71 = sphi 0, %s55
      %s79 = sphi 0, %s81
      %s82 = sphi 0, %s79
      %s83 = sphi 0, %s82
      %s99 = sphi 0, %s83
      %s107 = sphi 0, %s109
      %s110 = sphi 0, %s107
      %s111 = sphi 0, %s110
      %s127 = sphi 0, %s111
      %s135 = sphi 0, %s137
      %s138 = sphi 0, %s135
      %s139 = sphi 0, %s138
      %s155 = sphi 0, %s139
      %s163 = sphi 0, %s165
      %s166 = sphi 0, %s163
      %s167 = sphi 0, %s166
      %s183 = sphi 0, %s167
    $region4: #{tpu_custom_call.1} parent=1 // loop_header_branch
      %23 = sbr.rel (%p21) target = $region8
    $region5: #{tpu_custom_call.1} parent=1 // loop_body
      %s25 = ssub.s32 %s20, 1
      %s26 = ssub.s32 %s20, 2
      %s36 = sadd.s32 1, %s29
      %p37 = scmp.ge.s32.totalorder %s36, 1
      %s38 = scalar_select %p37, 0, %s36
      %s39 = sadd.s32 1, %s28
      %s40 = scalar_select %p37, %s39, %s28
      %p41 = scmp.ge.s32.totalorder %s40, 1
      %s42 = scalar_select %p41, 0, %s40
      %s43 = sadd.s32 1, %s27
      %s44 = scalar_select %p41, %s43, %s27
      %p45 = scmp.ge.s32.totalorder %s44, 2
      %s46 = scalar_select %p45, 0, %s44
      %s47 = ssub.s32 %s27, %s46
      %s48 = ssub.s32 %s28, %s42
      %s49 = sor.u32 %s47, %s48
      %p50 = scmp.eq.s32.totalorder %s49, 0
      %s52 = sadd.s32 %s51, 1
      %s53 = scalar_select %p50, %s51, %s52
      %p56 = pneg %p50
      %p57 = scmp.eq.s32.totalorder %s20, 1
      %p58 = por %p56, %p57
      %p59 = scmp.ne.s32.totalorder %s51, %s54
      %p60 = scmp.eq.s32.totalorder %s20, 0
      %p61 = por %p59, %p60
      %p62 = scmp.ne.s32.totalorder %s51, %s54
      %p63 = scmp.eq.s32.totalorder %s25, 1
      %p64 = por %p62, %p63
      %p65 = scmp.ne.s32.totalorder %s54, %s55
      %p66 = scmp.eq.s32.totalorder %s25, 0
      %p67 = por %p65, %p66
      %p68 = scmp.ne.s32.totalorder %s54, %s55
      %p69 = scmp.eq.s32.totalorder %s26, 1
      %p70 = por %p68, %p69
      %p72 = scmp.ne.s32.totalorder %s55, %s71
      %p73 = scmp.eq.s32.totalorder %s26, 0
      %p74 = por %p72, %p73
      %s75 = ssub.s32 %s27, %s46
      %s76 = ssub.s32 %s29, %s38
      %s77 = sor.u32 %s75, %s76
      %p78 = scmp.eq.s32.totalorder %s77, 0
      %s80 = sadd.s32 %s79, 1
      %s81 = scalar_select %p78, %s79, %s80
      %p84 = pneg %p78
      %p85 = scmp.eq.s32.totalorder %s20, 1
      %p86 = por %p84, %p85
      %p87 = scmp.ne.s32.totalorder %s79, %s82
      %p88 = scmp.eq.s32.totalorder %s20, 0
      %p89 = por %p87, %p88
      %p90 = scmp.ne.s32.totalorder %s79, %s82
      %p91 = scmp.eq.s32.totalorder %s25, 1
      %p92 = por %p90, %p91
      %p93 = scmp.ne.s32.totalorder %s82, %s83
      %p94 = scmp.eq.s32.totalorder %s25, 0
      %p95 = por %p93, %p94
      %p96 = scmp.ne.s32.totalorder %s82, %s83
      %p97 = scmp.eq.s32.totalorder %s26, 1
      %p98 = por %p96, %p97
      %p100 = scmp.ne.s32.totalorder %s83, %s99
      %p101 = scmp.eq.s32.totalorder %s26, 0
      %p102 = por %p100, %p101
      %s103 = ssub.s32 %s27, %s46
      %s104 = ssub.s32 %s28, %s42
      %s105 = sor.u32 %s103, %s104
      %p106 = scmp.eq.s32.totalorder %s105, 0
      %s108 = sadd.s32 %s107, 1
      %s109 = scalar_select %p106, %s107, %s108
      %p112 = pneg %p106
      %p113 = scmp.eq.s32.totalorder %s20, 1
      %p114 = por %p112, %p113
      %p115 = scmp.ne.s32.totalorder %s107, %s110
      %p116 = scmp.eq.s32.totalorder %s20, 0
      %p117 = por %p115, %p116
      %p118 = scmp.ne.s32.totalorder %s107, %s110
      %p119 = scmp.eq.s32.totalorder %s25, 1
      %p120 = por %p118, %p119
      %p121 = scmp.ne.s32.totalorder %s110, %s111
      %p122 = scmp.eq.s32.totalorder %s25, 0
      %p123 = por %p121, %p122
      %p124 = scmp.ne.s32.totalorder %s110, %s111
      %p125 = scmp.eq.s32.totalorder %s26, 1
      %p126 = por %p124, %p125
      %p128 = scmp.ne.s32.totalorder %s111, %s127
      %p129 = scmp.eq.s32.totalorder %s26, 0
      %p130 = por %p128, %p129
      %s131 = ssub.s32 %s27, %s46
      %s132 = ssub.s32 %s28, %s42
      %s133 = sor.u32 %s131, %s132
      %p134 = scmp.eq.s32.totalorder %s133, 0
      %s136 = sadd.s32 %s135, 1
      %s137 = scalar_select %p134, %s135, %s136
      %p140 = pneg %p134
      %p141 = scmp.eq.s32.totalorder %s20, 1
      %p142 = por %p140, %p141
      %p143 = scmp.ne.s32.totalorder %s135, %s138
      %p144 = scmp.eq.s32.totalorder %s20, 0
      %p145 = por %p143, %p144
      %p146 = scmp.ne.s32.totalorder %s135, %s138
      %p147 = scmp.eq.s32.totalorder %s25, 1
      %p148 = por %p146, %p147
      %p149 = scmp.ne.s32.totalorder %s138, %s139
      %p150 = scmp.eq.s32.totalorder %s25, 0
      %p151 = por %p149, %p150
      %p152 = scmp.ne.s32.totalorder %s138, %s139
      %p153 = scmp.eq.s32.totalorder %s26, 1
      %p154 = por %p152, %p153
      %p156 = scmp.ne.s32.totalorder %s139, %s155
      %p157 = scmp.eq.s32.totalorder %s26, 0
      %p158 = por %p156, %p157
      %s159 = ssub.s32 %s27, %s46
      %s160 = ssub.s32 %s28, %s42
      %s161 = sor.u32 %s159, %s160
      %p162 = scmp.eq.s32.totalorder %s161, 0
      %s164 = sadd.s32 %s163, 1
      %s165 = scalar_select %p162, %s163, %s164
      %p168 = pneg %p162
      %p169 = scmp.eq.s32.totalorder %s20, 1
      %p170 = por %p168, %p169
      %p171 = scmp.ne.s32.totalorder %s163, %s166
      %p172 = scmp.eq.s32.totalorder %s20, 0
      %p173 = por %p171, %p172
      %p174 = scmp.ne.s32.totalorder %s163, %s166
      %p175 = scmp.eq.s32.totalorder %s25, 1
      %p176 = por %p174, %p175
      %p177 = scmp.ne.s32.totalorder %s166, %s167
      %p178 = scmp.eq.s32.totalorder %s25, 0
      %p179 = por %p177, %p178
      %p180 = scmp.ne.s32.totalorder %s166, %s167
      %p181 = scmp.eq.s32.totalorder %s26, 1
      %p182 = por %p180, %p181
      %p184 = scmp.ne.s32.totalorder %s167, %s183
      %p185 = scmp.eq.s32.totalorder %s26, 0
      %p186 = por %p184, %p185
      %p187 = scmp.le.s32.totalorder 1, %s20
      %p188 = scmp.lt.s32.totalorder %s20, 3
      %p189 = pnand %p187, %p188
      %p190 = pneg %p189
      // Predicated region
      $region9: #{tpu_custom_call.1} parent=5 // pred_check
        _
      $region10: #{tpu_custom_call.1} parent=5 // pred_check_branch
        %192 = sbr.rel (%p189) target = $region12
      $region11: #{tpu_custom_call.1} parent=5 // pred_region
        %s193 = ssub.s32 %s20, 1
      $region12: #{tpu_custom_call.1} parent=5 // pred_fallthru
        _
      %p194 = scmp.lt.s32.totalorder %s20, 2
      // Predicated region
      $region13: #{tpu_custom_call.1} parent=5 // pred_check
        %p195 = pneg %p194
      $region14: #{tpu_custom_call.1} parent=5 // pred_check_branch
        %197 = sbr.rel (%p195) target = $region16
      $region15: #{tpu_custom_call.1} parent=5 // pred_region
        // Predicated region
        $region17: #{tpu_custom_call.1} parent=15 // pred_check
          %p198 = pneg %p61
        $region18: #{tpu_custom_call.1} parent=15 // pred_check_branch
          %200 = sbr.rel (%p198) target = $region20
        $region19: #{tpu_custom_call.1} parent=15 // pred_region
          %p201 = scmp.lt.s32.totalorder %s27, 1
          %s202 = scalar_select %p201, %s27, 1
          %p203 = scmp.lt.s32.totalorder %s28, 0
          %s204 = scalar_select %p203, %s28, 0
          %s205 = sadd.s32 %s204, %s202
          %s206 = smul.addr %s205, 4
          %s207 = scalar_lea.vmem %s0, %s206
        $region20: #{tpu_custom_call.1} parent=15 // pred_fallthru
          _
        // Predicated region
        $region21: #{tpu_custom_call.1} parent=15 // pred_check
          %p208 = pneg %p89
        $region22: #{tpu_custom_call.1} parent=15 // pred_check_branch
          %210 = sbr.rel (%p208) target = $region24
        $region23: #{tpu_custom_call.1} parent=15 // pred_region
          %s211 = sand.u32 %s79, 1
          %s212 = scalar_lea.sflag [#allocation4], %s211
          %s213 = sand.u32 %s79, 1
          %s214 = smul.addr %s213, 32
          %s215 = scalar_lea.vmem [#allocation3], %s214
          %s217 = ssub.s32 512, 512
          %218 = vsyncadd %s212, %s217
          %s219 = smul.addr %s27, 4
          %s220 = sadd.s32 %s29, %s219
          %s221 = smul.addr %s220, 128
          %s222 = scalar_lea.hbm %s1, %s221
          %s223 = sshll.u32 %s215, 4
          %s224 = int_to_ptr.vmem [resolvable:$true] %s223
          %229 = dma.hbm_to_vmem [thread:$0]  %s222, 512, %s224, %s212, 128, 128, 8
        $region24: #{tpu_custom_call.1} parent=15 // pred_fallthru
          _
      $region16: #{tpu_custom_call.1} parent=5 // pred_fallthru
        _
      %p230 = scmp.le.s32.totalorder 1, %s20
      %p231 = scmp.lt.s32.totalorder %s20, 3
      %p232 = pnand %p230, %p231
      %p233 = pneg %p232
      // Predicated region
      $region25: #{tpu_custom_call.1} parent=5 // pred_check
        _
      $region26: #{tpu_custom_call.1} parent=5 // pred_check_branch
        %235 = sbr.rel (%p232) target = $region28
      $region27: #{tpu_custom_call.1} parent=5 // pred_region
        %s236 = ssub.s32 %s20, 1
        %s237 = sand.u32 %s82, 1
        %s238 = scalar_lea.sflag [#allocation4], %s237
        %s239 = sand.u32 %s82, 1
        %s240 = smul.addr %s239, 32
        %s241 = scalar_lea.vmem [#allocation3], %s240
        // Predicated region
        $region29: #{tpu_custom_call.1} parent=27 // pred_check
          %p242 = pneg %p95
        $region30: #{tpu_custom_call.1} parent=27 // pred_check_branch
          %244 = sbr.rel (%p242) target = $region32
        $region31: #{tpu_custom_call.1} parent=27 // pred_region
          %245 = dma.done %s238, 512
        $region32: #{tpu_custom_call.1} parent=27 // pred_fallthru
          _
        %p246 = scmp.lt.s32.totalorder %s30, 1
        %s247 = scalar_select %p246, %s30, 1
        %p248 = scmp.lt.s32.totalorder %s31, 0
        %s249 = scalar_select %p248, %s31, 0
        %s250 = sadd.s32 %s249, %s247
        %s251 = smul.addr %s250, 4
        %s252 = scalar_lea.vmem %s0, %s251
        %p253 = pneg %p67
        %p254 = pneg %p64
        %s255 = sand.u32 %s82, 1
        %s256 = scalar_lea.sflag [#allocation4], %s255
        %s257 = sand.u32 %s82, 1
        %s258 = smul.addr %s257, 32
        %s259 = scalar_lea.vmem [#allocation3], %s258
        %p260 = pneg %p95
        %p261 = pneg %p92
        %p262 = pneg %p123
        %p263 = pneg %p120
        %s264 = sand.u32 %s110, 1
        %s265 = scalar_lea.sflag [#allocation5], %s264
        %s266 = sand.u32 %s110, 1
        %s267 = smul.addr %s266, 256
        %s268 = scalar_lea.vmem [#allocation6], %s267
        %p269 = pneg %p151
        %p270 = pneg %p148
        %s271 = sand.u32 %s25, 1
        %s272 = scalar_lea.sflag [#allocation8], %s271
        %s273 = sand.u32 %s138, 1
        %s274 = smul.addr %s273, 8
        %s275 = scalar_lea.vmem [#allocation7], %s274
        %p276 = pneg %p179
        %p277 = pneg %p176
        %s278 = sand.u32 %s25, 1
        %s279 = scalar_lea.sflag [#allocation8], %s278
        %s280 = sand.u32 %s166, 1
        %s281 = smul.addr %s280, 24
        %s282 = scalar_lea.vmem [#allocation9], %s281
        %p283 = scmp.lt.s32.totalorder %s30, 1
        %s284 = scalar_select %p283, %s30, 1
        %p285 = scmp.lt.s32.totalorder %s31, 0
        %s286 = scalar_select %p285, %s31, 0
        %s287 = sadd.s32 %s286, %s284
        %s288 = smul.addr %s287, 4
        %s289 = scalar_lea.vmem %s0, %s288
        %s290 = smul.u32 8, %s31
        %v291 = vld [vmem:[%s289] sm:$0x7]
        %v292 = vlaneseq
        %v293 = vshrl.u32 %v292, 7
        %v294 = vshra.s32 %v293, 2
        %v295 = vand.u32 %v294, 1
        %v296 = vcvt.s32.f32 %v295
        %v297 = vmax.f32 %v291, 1e-06
        %v298 = vmin.f32 %v297, 0.999999
        %v299 = vrcp.pop 0.33333334
        %v300 = vmul.f32 %v298, %v299
        %v301 = vfloor.f32 %v300
        %v302 = vlaneseq
        %v303 = vshrl.u32 %v302, 7
        %v304 = vsub.s32 0, %v303
        %v305 = vrot.slane %v301, %v304
        %v306 = vadd.f32 %v305, %v296
        %v307 = vcvt.f32.s32.to.zero.pseudo %v306
        %v308 = vmul.u32 %v307, 16
        %v309 = vshra.s32 %v293, 1
        %v310 = vand.u32 %v309, 1
        %v311 = vcvt.s32.f32 %v310
        %v312 = vlaneseq
        %v313 = vshrl.u32 %v312, 7
        %v314 = vsub.s32 1, %v313
        %v315 = vrot.slane %v301, %v314
        %v316 = vadd.f32 %v315, %v311
        %v317 = vcvt.f32.s32.to.zero.pseudo %v316
        %v318 = vmul.u32 %v317, 4
        %v319 = vadd.s32 %v308, %v318
        %v320 = vand.u32 %v293, 1
        %v321 = vcvt.s32.f32 %v320
        %v322 = vlaneseq
        %v323 = vshrl.u32 %v322, 7
        %v324 = vsub.s32 2, %v323
        %v325 = vrot.slane %v301, %v324
        %v326 = vadd.f32 %v325, %v321
        %v327 = vcvt.f32.s32.to.zero.pseudo %v326
        %v328 = vadd.s32 %v319, %v327
        %p329 = scmp.eq.s32.totalorder %s32, 0
        // Predicated region
        $region33: #{tpu_custom_call.1} parent=27 // pred_check
          %p330 = pneg %p329
        $region34: #{tpu_custom_call.1} parent=27 // pred_check_branch
          %332 = sbr.rel (%p330) target = $region36
        $region35: #{tpu_custom_call.1} parent=27 // pred_region
          %333 = vst [vmem:[#allocation2] sm:$0xff] 0.0
          %334 = vst [vmem:[#allocation2 + $0x8] sm:$0xff] 0.0
          %335 = vst [vmem:[#allocation2 + $0x10] sm:$0xff] 0.0
          %336 = vst [vmem:[#allocation2 + $0x18] sm:$0xff] 0.0
          %337 = vst [vmem:[#allocation2 + $0x20] sm:$0xff] 0.0
          %338 = vst [vmem:[#allocation2 + $0x28] sm:$0xff] 0.0
          %339 = vst [vmem:[#allocation2 + $0x30] sm:$0xff] 0.0
          %340 = vst [vmem:[#allocation2 + $0x38] sm:$0xff] 0.0
          %341 = vst [vmem:[#allocation2 + $0x40] sm:$0xff] 0.0
          %342 = vst [vmem:[#allocation2 + $0x48] sm:$0xff] 0.0
          %343 = vst [vmem:[#allocation2 + $0x50] sm:$0xff] 0.0
          %344 = vst [vmem:[#allocation2 + $0x58] sm:$0xff] 0.0
          %345 = vst [vmem:[#allocation2 + $0x60] sm:$0xff] 0.0
          %346 = vst [vmem:[#allocation2 + $0x68] sm:$0xff] 0.0
          %347 = vst [vmem:[#allocation2 + $0x70] sm:$0xff] 0.0
          %348 = vst [vmem:[#allocation2 + $0x78] sm:$0xff] 0.0
          %349 = vst [vmem:[#allocation2 + $0x80] sm:$0xff] 0.0
          %350 = vst [vmem:[#allocation2 + $0x88] sm:$0xff] 0.0
          %351 = vst [vmem:[#allocation2 + $0x90] sm:$0xff] 0.0
          %352 = vst [vmem:[#allocation2 + $0x98] sm:$0xff] 0.0
          %353 = vst [vmem:[#allocation2 + $0xa0] sm:$0xff] 0.0
          %354 = vst [vmem:[#allocation2 + $0xa8] sm:$0xff] 0.0
          %355 = vst [vmem:[#allocation2 + $0xb0] sm:$0xff] 0.0
          %356 = vst [vmem:[#allocation2 + $0xb8] sm:$0xff] 0.0
          %357 = vst [vmem:[#allocation2 + $0xc0] sm:$0xff] 0.0
          %358 = vst [vmem:[#allocation2 + $0xc8] sm:$0xff] 0.0
          %359 = vst [vmem:[#allocation2 + $0xd0] sm:$0xff] 0.0
          %360 = vst [vmem:[#allocation2 + $0xd8] sm:$0xff] 0.0
          %361 = vst [vmem:[#allocation2 + $0xe0] sm:$0xff] 0.0
          %362 = vst [vmem:[#allocation2 + $0xe8] sm:$0xff] 0.0
          %363 = vst [vmem:[#allocation2 + $0xf0] sm:$0xff] 0.0
          %364 = vst [vmem:[#allocation2 + $0xf8] sm:$0xff] 0.0
          %v365 = vmul.f32 %v301, 0.33333334
          %v366 = vmul.f32 %v296, 0.33333334
          %v367 = vlaneseq
          %v368 = vshrl.u32 %v367, 7
          %v369 = vsub.s32 0, %v368
          %v370 = vrot.slane %v365, %v369
          %v371 = vadd.f32 %v370, %v366
          %v372 = vsub.f32 1.0, %v296
          %v373 = vmul.f32 %v372, 0.33333334
          %v374 = vadd.f32 %v370, %v373
          %v375 = vlaneseq
          %v376 = vshrl.u32 %v375, 7
          %v377 = vsub.s32 0, %v376
          %v378 = vrot.slane %v298, %v377
          %v379 = vsub.f32 %v378, %v374
          %v380 = vand.u32 2147483647, %v379
          %v381 = vmul.f32 %v380, %v299
          %v382 = vsub.f32 %v378, %v371
          %v383 = vmul.f32 %v382, %v299
          %384 = vst [vmem:[%s282] sm:$0xff] %v383
          %v385 = vmul.f32 %v311, 0.33333334
          %v386 = vlaneseq
          %v387 = vshrl.u32 %v386, 7
          %v388 = vsub.s32 1, %v387
          %v389 = vrot.slane %v365, %v388
          %v390 = vadd.f32 %v389, %v385
          %v391 = vsub.f32 1.0, %v311
          %v392 = vmul.f32 %v391, 0.33333334
          %v393 = vadd.f32 %v389, %v392
          %v394 = vlaneseq
          %v395 = vshrl.u32 %v394, 7
          %v396 = vsub.s32 1, %v395
          %v397 = vrot.slane %v298, %v396
          %v398 = vsub.f32 %v397, %v393
          %v399 = vand.u32 2147483647, %v398
          %v400 = vmul.f32 %v399, %v299
          %v401 = vmul.f32 %v381, %v400
          %v402 = vsub.f32 %v397, %v390
          %v403 = vmul.f32 %v402, %v299
          %s404 = scalar_lea.vmem %s282, 8 [#allocation9]
          %405 = vst [vmem:[%s404] sm:$0xff] %v403
          %v406 = vmul.f32 %v321, 0.33333334
          %v407 = vlaneseq
          %v408 = vshrl.u32 %v407, 7
          %v409 = vsub.s32 2, %v408
          %v410 = vrot.slane %v365, %v409
          %v411 = vadd.f32 %v410, %v406
          %v412 = vsub.f32 1.0, %v321
          %v413 = vmul.f32 %v412, 0.33333334
          %v414 = vadd.f32 %v410, %v413
          %v415 = vlaneseq
          %v416 = vshrl.u32 %v415, 7
          %v417 = vsub.s32 2, %v416
          %v418 = vrot.slane %v298, %v417
          %v419 = vsub.f32 %v418, %v414
          %v420 = vand.u32 2147483647, %v419
          %v421 = vmul.f32 %v420, %v299
          %v422 = vmul.f32 %v401, %v421
          %v423 = vsub.f32 %v418, %v411
          %v424 = vmul.f32 %v423, %v299
          %s425 = scalar_lea.vmem %s282, 16 [#allocation9]
          %426 = vst [vmem:[%s425] sm:$0xff] %v424
          %427 = vst [vmem:[%s275] sm:$0xff] %v422
        $region36: #{tpu_custom_call.1} parent=27 // pred_fallthru
          _
        %v428 = vld [vmem:[%s241] sm:$0xff]
        %v429 = vld [vmem:[%s241 + $0x8] sm:$0xff]
        %v430 = vld [vmem:[%s241 + $0x10] sm:$0xff]
        %v431 = vld [vmem:[%s241 + $0x18] sm:$0xff]
        %s432 = smul.u32 %s32, 128
        %v433 = vstv %s432
        %v434 = vsub.s32 %v328, %v433
        %v435 = vadd.s32 %v293, 8
        %v436 = vadd.s32 %v293, 16
        %v437 = vadd.s32 %v293, 24
        %v438 = vadd.s32 %v293, 32
        %v439 = vadd.s32 %v293, 40
        %v440 = vadd.s32 %v293, 48
        %v441 = vadd.s32 %v293, 56
        %v442 = vadd.s32 %v293, 64
        %v443 = vadd.s32 %v293, 72
        %v444 = vadd.s32 %v293, 80
        %v445 = vadd.s32 %v293, 88
        %v446 = vadd.s32 %v293, 96
        %v447 = vadd.s32 %v293, 104
        %v448 = vadd.s32 %v293, 112
        %v449 = vadd.s32 %v293, 120
        %v450 = vlaneseq
        %v451 = vshrl.u32 %v450, 7
        %v452 = vsub.s32 0, %v451
        %v453 = vrot.slane %v434, %v452
        %vm454 = vcmp.eq.s32.totalorder %v293, %v453
        %vm455 = vcmp.eq.s32.totalorder %v435, %v453
        %vm456 = vcmp.eq.s32.totalorder %v436, %v453
        %vm457 = vcmp.eq.s32.totalorder %v437, %v453
        %vm458 = vcmp.eq.s32.totalorder %v438, %v453
        %vm459 = vcmp.eq.s32.totalorder %v439, %v453
        %vm460 = vcmp.eq.s32.totalorder %v440, %v453
        %vm461 = vcmp.eq.s32.totalorder %v441, %v453
        %vm462 = vcmp.eq.s32.totalorder %v442, %v453
        %vm463 = vcmp.eq.s32.totalorder %v443, %v453
        %vm464 = vcmp.eq.s32.totalorder %v444, %v453
        %vm465 = vcmp.eq.s32.totalorder %v445, %v453
        %vm466 = vcmp.eq.s32.totalorder %v446, %v453
        %vm467 = vcmp.eq.s32.totalorder %v447, %v453
        %vm468 = vcmp.eq.s32.totalorder %v448, %v453
        %vm469 = vcmp.eq.s32.totalorder %v449, %v453
        %v470 = vsel %vm454, 1, 0
        %v471 = vsel %vm455, 1, 0
        %v472 = vsel %vm456, 1, 0
        %v473 = vsel %vm457, 1, 0
        %v474 = vsel %vm458, 1, 0
        %v475 = vsel %vm459, 1, 0
        %v476 = vsel %vm460, 1, 0
        %v477 = vsel %vm461, 1, 0
        %v478 = vsel %vm462, 1, 0
        %v479 = vsel %vm463, 1, 0
        %v480 = vsel %vm464, 1, 0
        %v481 = vsel %vm465, 1, 0
        %v482 = vsel %vm466, 1, 0
        %v483 = vsel %vm467, 1, 0
        %v484 = vsel %vm468, 1, 0
        %v485 = vsel %vm469, 1, 0
        %v486 = vcvt.s32.f32 %v470
        %v487 = vcvt.s32.f32 %v471
        %v488 = vcvt.s32.f32 %v472
        %v489 = vcvt.s32.f32 %v473
        %v490 = vcvt.s32.f32 %v474
        %v491 = vcvt.s32.f32 %v475
        %v492 = vcvt.s32.f32 %v476
        %v493 = vcvt.s32.f32 %v477
        %v494 = vcvt.s32.f32 %v478
        %v495 = vcvt.s32.f32 %v479
        %v496 = vcvt.s32.f32 %v480
        %v497 = vcvt.s32.f32 %v481
        %v498 = vcvt.s32.f32 %v482
        %v499 = vcvt.s32.f32 %v483
        %v500 = vcvt.s32.f32 %v484
        %v501 = vcvt.s32.f32 %v485
        %v502 = vld [vmem:[#allocation2] sm:$0xff]
        %v503 = vld [vmem:[#allocation2 + $0x40] sm:$0xff]
        %v504 = vld [vmem:[#allocation2 + $0x80] sm:$0xff]
        %v505 = vld [vmem:[#allocation2 + $0xc0] sm:$0xff]
        %506 = vmatprep.subr.mxu0 0.0
        %507 = vmatpush1.msra.mxu0 %v486
        %508 = vmatprep.subr.mxu0 0.0
        %509 = vmatpush1.msra.mxu0 %v487
        %510 = vmatprep.subr.mxu0 0.0
        %511 = vmatpush1.msra.mxu0 %v488
        %512 = vmatprep.subr.mxu0 0.0
        %513 = vmatpush1.msra.mxu0 %v489
        %514 = vmatprep.subr.mxu0 0.0
        %515 = vmatpush1.msra.mxu0 %v490
        %516 = vmatprep.subr.mxu0 0.0
        %517 = vmatpush1.msra.mxu0 %v491
        %518 = vmatprep.subr.mxu0 0.0
        %519 = vmatpush1.msra.mxu0 %v492
        %520 = vmatprep.subr.mxu0 0.0
        %521 = vmatpush1.msra.mxu0 %v493
        %522 = vmatprep.subr.mxu0 0.0
        %523 = vmatpush1.msra.mxu0 %v494
        %524 = vmatprep.subr.mxu0 0.0
        %525 = vmatpush1.msra.mxu0 %v495
        %526 = vmatprep.subr.mxu0 0.0
        %527 = vmatpush1.msra.mxu0 %v496
        %528 = vmatprep.subr.mxu0 0.0
        %529 = vmatpush1.msra.mxu0 %v497
        %530 = vmatprep.subr.mxu0 0.0
        %531 = vmatpush1.msra.mxu0 %v498
        %532 = vmatprep.subr.mxu0 0.0
        %533 = vmatpush1.msra.mxu0 %v499
        %534 = vmatprep.subr.mxu0 0.0
        %535 = vmatpush1.msra.mxu0 %v500
        %536 = vmatprep.subr.mxu0 0.0
        %537 = vmatpush1.msra.mxu0 %v501
        %538 = vmatprep.subr.mxu0 0.0
        %539 = vmatpush1.msra.mxu0 0.0
        %540 = vmatprep.subr.mxu0 0.0
        %541 = vmatpush1.msra.mxu0 0.0
        %542 = vmatprep.subr.mxu0 0.0
        %543 = vmatpush1.msra.mxu0 0.0
        %544 = vmatprep.subr.mxu0 0.0
        %545 = vmatpush1.msra.mxu0 0.0
        %546 = vmatprep.subr.mxu0 0.0
        %547 = vmatpush1.msra.mxu0 0.0
        %548 = vmatprep.subr.mxu0 0.0
        %549 = vmatpush1.msra.mxu0 0.0
        %550 = vmatprep.subr.mxu0 0.0
        %551 = vmatpush1.msra.mxu0 0.0
        %552 = vmatprep.subr.mxu0 0.0
        %553 = vmatpush1.msra.mxu0 0.0
        %554 = vmatprep.subr.mxu0 0.0
        %555 = vmatpush1.msra.mxu0 0.0
        %556 = vmatprep.subr.mxu0 0.0
        %557 = vmatpush1.msra.mxu0 0.0
        %558 = vmatprep.subr.mxu0 0.0
        %559 = vmatpush1.msra.mxu0 0.0
        %560 = vmatprep.subr.mxu0 0.0
        %561 = vmatpush1.msra.mxu0 0.0
        %562 = vmatprep.subr.mxu0 0.0
        %563 = vmatpush1.msra.mxu0 0.0
        %564 = vmatprep.subr.mxu0 0.0
        %565 = vmatpush1.msra.mxu0 0.0
        %566 = vmatprep.subr.mxu0 0.0
        %567 = vmatpush1.msra.mxu0 0.0
        %568 = vmatprep.subr.mxu0 0.0
        %569 = vmatpush1.msra.mxu0 0.0
        %570 = vmatprep.mubr.f32.mxu0 0.0
        %571 = vmatmul.mubr.f32.gmra.mrb[0].mxu0 %v428
        %v572 = vpop.f32.mrb[0].mxu0
        %v573 = vadd.f32 0.0, %v572
        %v574 = vpop.f32.mrb[0].mxu0
        %575 = vmatprep.mubr.f32.mxu0 0.0
        %576 = vmatmul.mubr.f32.gmra.mrb[0].mxu0 %v429
        %v577 = vpop.f32.mrb[0].mxu0
        %v578 = vadd.f32 0.0, %v577
        %v579 = vpop.f32.mrb[0].mxu0
        %580 = vmatprep.mubr.f32.mxu0 0.0
        %581 = vmatmul.mubr.f32.gmra.mrb[0].mxu0 %v430
        %v582 = vpop.f32.mrb[0].mxu0
        %v583 = vadd.f32 0.0, %v582
        %v584 = vpop.f32.mrb[0].mxu0
        %585 = vmatprep.mubr.f32.mxu0 0.0
        %586 = vmatmul.mubr.f32.gmra.mrb[0].mxu0 %v431
        %v587 = vpop.f32.mrb[0].mxu0
        %v588 = vadd.f32 0.0, %v587
        %v589 = vpop.f32.mrb[0].mxu0
        %590 = vdwg.mxu0
        %v591 = vadd.f32 %v502, %v573
        %v592 = vadd.f32 %v503, %v578
        %v593 = vadd.f32 %v504, %v583
        %v594 = vadd.f32 %v505, %v588
        %595 = vst [vmem:[#allocation2] sm:$0xff] %v591
        %596 = vst [vmem:[#allocation2 + $0x40] sm:$0xff] %v592
        %597 = vst [vmem:[#allocation2 + $0x80] sm:$0xff] %v593
        %598 = vst [vmem:[#allocation2 + $0xc0] sm:$0xff] %v594
        %v599 = vlaneseq
        %v600 = vshrl.u32 %v599, 7
        %v601 = vsub.s32 1, %v600
        %v602 = vrot.slane %v434, %v601
        %vm603 = vcmp.eq.s32.totalorder %v293, %v602
        %vm604 = vcmp.eq.s32.totalorder %v435, %v602
        %vm605 = vcmp.eq.s32.totalorder %v436, %v602
        %vm606 = vcmp.eq.s32.totalorder %v437, %v602
        %vm607 = vcmp.eq.s32.totalorder %v438, %v602
        %vm608 = vcmp.eq.s32.totalorder %v439, %v602
        %vm609 = vcmp.eq.s32.totalorder %v440, %v602
        %vm610 = vcmp.eq.s32.totalorder %v441, %v602
        %vm611 = vcmp.eq.s32.totalorder %v442, %v602
        %vm612 = vcmp.eq.s32.totalorder %v443, %v602
        %vm613 = vcmp.eq.s32.totalorder %v444, %v602
        %vm614 = vcmp.eq.s32.totalorder %v445, %v602
        %vm615 = vcmp.eq.s32.totalorder %v446, %v602
        %vm616 = vcmp.eq.s32.totalorder %v447, %v602
        %vm617 = vcmp.eq.s32.totalorder %v448, %v602
        %vm618 = vcmp.eq.s32.totalorder %v449, %v602
        %v619 = vsel %vm603, 1, 0
        %v620 = vsel %vm604, 1, 0
        %v621 = vsel %vm605, 1, 0
        %v622 = vsel %vm606, 1, 0
        %v623 = vsel %vm607, 1, 0
        %v624 = vsel %vm608, 1, 0
        %v625 = vsel %vm609, 1, 0
        %v626 = vsel %vm610, 1, 0
        %v627 = vsel %vm611, 1, 0
        %v628 = vsel %vm612, 1, 0
        %v629 = vsel %vm613, 1, 0
        %v630 = vsel %vm614, 1, 0
        %v631 = vsel %vm615, 1, 0
        %v632 = vsel %vm616, 1, 0
        %v633 = vsel %vm617, 1, 0
        %v634 = vsel %vm618, 1, 0
        %v635 = vcvt.s32.f32 %v619
        %v636 = vcvt.s32.f32 %v620
        %v637 = vcvt.s32.f32 %v621
        %v638 = vcvt.s32.f32 %v622
        %v639 = vcvt.s32.f32 %v623
        %v640 = vcvt.s32.f32 %v624
        %v641 = vcvt.s32.f32 %v625
        %v642 = vcvt.s32.f32 %v626
        %v643 = vcvt.s32.f32 %v627
        %v644 = vcvt.s32.f32 %v628
        %v645 = vcvt.s32.f32 %v629
        %v646 = vcvt.s32.f32 %v630
        %v647 = vcvt.s32.f32 %v631
        %v648 = vcvt.s32.f32 %v632
        %v649 = vcvt.s32.f32 %v633
        %v650 = vcvt.s32.f32 %v634
        %v651 = vld [vmem:[#allocation2 + $0x8] sm:$0xff]
        %v652 = vld [vmem:[#allocation2 + $0x48] sm:$0xff]
        %v653 = vld [vmem:[#allocation2 + $0x88] sm:$0xff]
        %v654 = vld [vmem:[#allocation2 + $0xc8] sm:$0xff]
        %655 = vmatprep.subr.mxu0 0.0
        %656 = vmatpush1.msra.mxu0 %v635
        %657 = vmatprep.subr.mxu0 0.0
        %658 = vmatpush1.msra.mxu0 %v636
        %659 = vmatprep.subr.mxu0 0.0
        %660 = vmatpush1.msra.mxu0 %v637
        %661 = vmatprep.subr.mxu0 0.0
        %662 = vmatpush1.msra.mxu0 %v638
        %663 = vmatprep.subr.mxu0 0.0
        %664 = vmatpush1.msra.mxu0 %v639
        %665 = vmatprep.subr.mxu0 0.0
        %666 = vmatpush1.msra.mxu0 %v640
        %667 = vmatprep.subr.mxu0 0.0
        %668 = vmatpush1.msra.mxu0 %v641
        %669 = vmatprep.subr.mxu0 0.0
        %670 = vmatpush1.msra.mxu0 %v642
        %671 = vmatprep.subr.mxu0 0.0
        %672 = vmatpush1.msra.mxu0 %v643
        %673 = vmatprep.subr.mxu0 0.0
        %674 = vmatpush1.msra.mxu0 %v644
        %675 = vmatprep.subr.mxu0 0.0
        %676 = vmatpush1.msra.mxu0 %v645
        %677 = vmatprep.subr.mxu0 0.0
        %678 = vmatpush1.msra.mxu0 %v646
        %679 = vmatprep.subr.mxu0 0.0
        %680 = vmatpush1.msra.mxu0 %v647
        %681 = vmatprep.subr.mxu0 0.0
        %682 = vmatpush1.msra.mxu0 %v648
        %683 = vmatprep.subr.mxu0 0.0
        %684 = vmatpush1.msra.mxu0 %v649
        %685 = vmatprep.subr.mxu0 0.0
        %686 = vmatpush1.msra.mxu0 %v650
        %687 = vmatprep.subr.mxu0 0.0
        %688 = vmatpush1.msra.mxu0 0.0
        %689 = vmatprep.subr.mxu0 0.0
        %690 = vmatpush1.msra.mxu0 0.0
        %691 = vmatprep.subr.mxu0 0.0
        %692 = vmatpush1.msra.mxu0 0.0
        %693 = vmatprep.subr.mxu0 0.0
        %694 = vmatpush1.msra.mxu0 0.0
        %695 = vmatprep.subr.mxu0 0.0
        %696 = vmatpush1.msra.mxu0 0.0
        %697 = vmatprep.subr.mxu0 0.0
        %698 = vmatpush1.msra.mxu0 0.0
        %699 = vmatprep.subr.mxu0 0.0
        %700 = vmatpush1.msra.mxu0 0.0
        %701 = vmatprep.subr.mxu0 0.0
        %702 = vmatpush1.msra.mxu0 0.0
        %703 = vmatprep.subr.mxu0 0.0
        %704 = vmatpush1.msra.mxu0 0.0
        %705 = vmatprep.subr.mxu0 0.0
        %706 = vmatpush1.msra.mxu0 0.0
        %707 = vmatprep.subr.mxu0 0.0
        %708 = vmatpush1.msra.mxu0 0.0
        %709 = vmatprep.subr.mxu0 0.0
        %710 = vmatpush1.msra.mxu0 0.0
        %711 = vmatprep.subr.mxu0 0.0
        %712 = vmatpush1.msra.mxu0 0.0
        %713 = vmatprep.subr.mxu0 0.0
        %714 = vmatpush1.msra.mxu0 0.0
        %715 = vmatprep.subr.mxu0 0.0
        %716 = vmatpush1.msra.mxu0 0.0
        %717 = vmatprep.subr.mxu0 0.0
        %718 = vmatpush1.msra.mxu0 0.0
        %719 = vmatprep.mubr.f32.mxu0 0.0
        %720 = vmatmul.mubr.f32.gmra.mrb[0].mxu0 %v428
        %v721 = vpop.f32.mrb[0].mxu0
        %v722 = vadd.f32 0.0, %v721
        %v723 = vpop.f32.mrb[0].mxu0
        %724 = vmatprep.mubr.f32.mxu0 0.0
        %725 = vmatmul.mubr.f32.gmra.mrb[0].mxu0 %v429
        %v726 = vpop.f32.mrb[0].mxu0
        %v727 = vadd.f32 0.0, %v726
        %v728 = vpop.f32.mrb[0].mxu0
        %729 = vmatprep.mubr.f32.mxu0 0.0
        %730 = vmatmul.mubr.f32.gmra.mrb[0].mxu0 %v430
        %v731 = vpop.f32.mrb[0].mxu0
        %v732 = vadd.f32 0.0, %v731
        %v733 = vpop.f32.mrb[0].mxu0
        %734 = vmatprep.mubr.f32.mxu0 0.0
        %735 = vmatmul.mubr.f32.gmra.mrb[0].mxu0 %v431
        %v736 = vpop.f32.mrb[0].mxu0
        %v737 = vadd.f32 0.0, %v736
        %v738 = vpop.f32.mrb[0].mxu0
        %739 = vdwg.mxu0
        %v740 = vadd.f32 %v651, %v722
        %v741 = vadd.f32 %v652, %v727
        %v742 = vadd.f32 %v653, %v732
        %v743 = vadd.f32 %v654, %v737
        %744 = vst [vmem:[#allocation2 + $0x8] sm:$0xff] %v740
        %745 = vst [vmem:[#allocation2 + $0x48] sm:$0xff] %v741
        %746 = vst [vmem:[#allocation2 + $0x88] sm:$0xff] %v742
        %747 = vst [vmem:[#allocation2 + $0xc8] sm:$0xff] %v743
        %v748 = vlaneseq
        %v749 = vshrl.u32 %v748, 7
        %v750 = vsub.s32 2, %v749
        %v751 = vrot.slane %v434, %v750
        %vm752 = vcmp.eq.s32.totalorder %v293, %v751
        %vm753 = vcmp.eq.s32.totalorder %v435, %v751
        %vm754 = vcmp.eq.s32.totalorder %v436, %v751
        %vm755 = vcmp.eq.s32.totalorder %v437, %v751
        %vm756 = vcmp.eq.s32.totalorder %v438, %v751
        %vm757 = vcmp.eq.s32.totalorder %v439, %v751
        %vm758 = vcmp.eq.s32.totalorder %v440, %v751
        %vm759 = vcmp.eq.s32.totalorder %v441, %v751
        %vm760 = vcmp.eq.s32.totalorder %v442, %v751
        %vm761 = vcmp.eq.s32.totalorder %v443, %v751
        %vm762 = vcmp.eq.s32.totalorder %v444, %v751
        %vm763 = vcmp.eq.s32.totalorder %v445, %v751
        %vm764 = vcmp.eq.s32.totalorder %v446, %v751
        %vm765 = vcmp.eq.s32.totalorder %v447, %v751
        %vm766 = vcmp.eq.s32.totalorder %v448, %v751
        %vm767 = vcmp.eq.s32.totalorder %v449, %v751
        %v768 = vsel %vm752, 1, 0
        %v769 = vsel %vm753, 1, 0
        %v770 = vsel %vm754, 1, 0
        %v771 = vsel %vm755, 1, 0
        %v772 = vsel %vm756, 1, 0
        %v773 = vsel %vm757, 1, 0
        %v774 = vsel %vm758, 1, 0
        %v775 = vsel %vm759, 1, 0
        %v776 = vsel %vm760, 1, 0
        %v777 = vsel %vm761, 1, 0
        %v778 = vsel %vm762, 1, 0
        %v779 = vsel %vm763, 1, 0
        %v780 = vsel %vm764, 1, 0
        %v781 = vsel %vm765, 1, 0
        %v782 = vsel %vm766, 1, 0
        %v783 = vsel %vm767, 1, 0
        %v784 = vcvt.s32.f32 %v768
        %v785 = vcvt.s32.f32 %v769
        %v786 = vcvt.s32.f32 %v770
        %v787 = vcvt.s32.f32 %v771
        %v788 = vcvt.s32.f32 %v772
        %v789 = vcvt.s32.f32 %v773
        %v790 = vcvt.s32.f32 %v774
        %v791 = vcvt.s32.f32 %v775
        %v792 = vcvt.s32.f32 %v776
        %v793 = vcvt.s32.f32 %v777
        %v794 = vcvt.s32.f32 %v778
        %v795 = vcvt.s32.f32 %v779
        %v796 = vcvt.s32.f32 %v780
        %v797 = vcvt.s32.f32 %v781
        %v798 = vcvt.s32.f32 %v782
        %v799 = vcvt.s32.f32 %v783
        %v800 = vld [vmem:[#allocation2 + $0x10] sm:$0xff]
        %v801 = vld [vmem:[#allocation2 + $0x50] sm:$0xff]
        %v802 = vld [vmem:[#allocation2 + $0x90] sm:$0xff]
        %v803 = vld [vmem:[#allocation2 + $0xd0] sm:$0xff]
        %804 = vmatprep.subr.mxu0 0.0
        %805 = vmatpush1.msra.mxu0 %v784
        %806 = vmatprep.subr.mxu0 0.0
        %807 = vmatpush1.msra.mxu0 %v785
        %808 = vmatprep.subr.mxu0 0.0
        %809 = vmatpush1.msra.mxu0 %v786
        %810 = vmatprep.subr.mxu0 0.0
        %811 = vmatpush1.msra.mxu0 %v787
        %812 = vmatprep.subr.mxu0 0.0
        %813 = vmatpush1.msra.mxu0 %v788
        %814 = vmatprep.subr.mxu0 0.0
        %815 = vmatpush1.msra.mxu0 %v789
        %816 = vmatprep.subr.mxu0 0.0
        %817 = vmatpush1.msra.mxu0 %v790
        %818 = vmatprep.subr.mxu0 0.0
        %819 = vmatpush1.msra.mxu0 %v791
        %820 = vmatprep.subr.mxu0 0.0
        %821 = vmatpush1.msra.mxu0 %v792
        %822 = vmatprep.subr.mxu0 0.0
        %823 = vmatpush1.msra.mxu0 %v793
        %824 = vmatprep.subr.mxu0 0.0
        %825 = vmatpush1.msra.mxu0 %v794
        %826 = vmatprep.subr.mxu0 0.0
        %827 = vmatpush1.msra.mxu0 %v795
        %828 = vmatprep.subr.mxu0 0.0
        %829 = vmatpush1.msra.mxu0 %v796
        %830 = vmatprep.subr.mxu0 0.0
        %831 = vmatpush1.msra.mxu0 %v797
        %832 = vmatprep.subr.mxu0 0.0
        %833 = vmatpush1.msra.mxu0 %v798
        %834 = vmatprep.subr.mxu0 0.0
        %835 = vmatpush1.msra.mxu0 %v799
        %836 = vmatprep.subr.mxu0 0.0
        %837 = vmatpush1.msra.mxu0 0.0
        %838 = vmatprep.subr.mxu0 0.0
        %839 = vmatpush1.msra.mxu0 0.0
        %840 = vmatprep.subr.mxu0 0.0
        %841 = vmatpush1.msra.mxu0 0.0
        %842 = vmatprep.subr.mxu0 0.0
        %843 = vmatpush1.msra.mxu0 0.0
        %844 = vmatprep.subr.mxu0 0.0
        %845 = vmatpush1.msra.mxu0 0.0
        %846 = vmatprep.subr.mxu0 0.0
        %847 = vmatpush1.msra.mxu0 0.0
        %848 = vmatprep.subr.mxu0 0.0
        %849 = vmatpush1.msra.mxu0 0.0
        %850 = vmatprep.subr.mxu0 0.0
        %851 = vmatpush1.msra.mxu0 0.0
        %852 = vmatprep.subr.mxu0 0.0
        %853 = vmatpush1.msra.mxu0 0.0
        %854 = vmatprep.subr.mxu0 0.0
        %855 = vmatpush1.msra.mxu0 0.0
        %856 = vmatprep.subr.mxu0 0.0
        %857 = vmatpush1.msra.mxu0 0.0
        %858 = vmatprep.subr.mxu0 0.0
        %859 = vmatpush1.msra.mxu0 0.0
        %860 = vmatprep.subr.mxu0 0.0
        %861 = vmatpush1.msra.mxu0 0.0
        %862 = vmatprep.subr.mxu0 0.0
        %863 = vmatpush1.msra.mxu0 0.0
        %864 = vmatprep.subr.mxu0 0.0
        %865 = vmatpush1.msra.mxu0 0.0
        %866 = vmatprep.subr.mxu0 0.0
        %867 = vmatpush1.msra.mxu0 0.0
        %868 = vmatprep.mubr.f32.mxu0 0.0
        %869 = vmatmul.mubr.f32.gmra.mrb[0].mxu0 %v428
        %v870 = vpop.f32.mrb[0].mxu0
        %v871 = vadd.f32 0.0, %v870
        %v872 = vpop.f32.mrb[0].mxu0
        %873 = vmatprep.mubr.f32.mxu0 0.0
        %874 = vmatmul.mubr.f32.gmra.mrb[0].mxu0 %v429
        %v875 = vpop.f32.mrb[0].mxu0
        %v876 = vadd.f32 0.0, %v875
        %v877 = vpop.f32.mrb[0].mxu0
        %878 = vmatprep.mubr.f32.mxu0 0.0
        %879 = vmatmul.mubr.f32.gmra.mrb[0].mxu0 %v430
        %v880 = vpop.f32.mrb[0].mxu0
        %v881 = vadd.f32 0.0, %v880
        %v882 = vpop.f32.mrb[0].mxu0
        %883 = vmatprep.mubr.f32.mxu0 0.0
        %884 = vmatmul.mubr.f32.gmra.mrb[0].mxu0 %v431
        %v885 = vpop.f32.mrb[0].mxu0
        %v886 = vadd.f32 0.0, %v885
        %v887 = vpop.f32.mrb[0].mxu0
        %888 = vdwg.mxu0
        %v889 = vadd.f32 %v800, %v871
        %v890 = vadd.f32 %v801, %v876
        %v891 = vadd.f32 %v802, %v881
        %v892 = vadd.f32 %v803, %v886
        %893 = vst [vmem:[#allocation2 + $0x10] sm:$0xff] %v889
        %894 = vst [vmem:[#allocation2 + $0x50] sm:$0xff] %v890
        %895 = vst [vmem:[#allocation2 + $0x90] sm:$0xff] %v891
        %896 = vst [vmem:[#allocation2 + $0xd0] sm:$0xff] %v892
        %v897 = vlaneseq
        %v898 = vshrl.u32 %v897, 7
        %v899 = vsub.s32 3, %v898
        %v900 = vrot.slane %v434, %v899
        %vm901 = vcmp.eq.s32.totalorder %v293, %v900
        %vm902 = vcmp.eq.s32.totalorder %v435, %v900
        %vm903 = vcmp.eq.s32.totalorder %v436, %v900
        %vm904 = vcmp.eq.s32.totalorder %v437, %v900
        %vm905 = vcmp.eq.s32.totalorder %v438, %v900
        %vm906 = vcmp.eq.s32.totalorder %v439, %v900
        %vm907 = vcmp.eq.s32.totalorder %v440, %v900
        %vm908 = vcmp.eq.s32.totalorder %v441, %v900
        %vm909 = vcmp.eq.s32.totalorder %v442, %v900
        %vm910 = vcmp.eq.s32.totalorder %v443, %v900
        %vm911 = vcmp.eq.s32.totalorder %v444, %v900
        %vm912 = vcmp.eq.s32.totalorder %v445, %v900
        %vm913 = vcmp.eq.s32.totalorder %v446, %v900
        %vm914 = vcmp.eq.s32.totalorder %v447, %v900
        %vm915 = vcmp.eq.s32.totalorder %v448, %v900
        %vm916 = vcmp.eq.s32.totalorder %v449, %v900
        %v917 = vsel %vm901, 1, 0
        %v918 = vsel %vm902, 1, 0
        %v919 = vsel %vm903, 1, 0
        %v920 = vsel %vm904, 1, 0
        %v921 = vsel %vm905, 1, 0
        %v922 = vsel %vm906, 1, 0
        %v923 = vsel %vm907, 1, 0
        %v924 = vsel %vm908, 1, 0
        %v925 = vsel %vm909, 1, 0
        %v926 = vsel %vm910, 1, 0
        %v927 = vsel %vm911, 1, 0
        %v928 = vsel %vm912, 1, 0
        %v929 = vsel %vm913, 1, 0
        %v930 = vsel %vm914, 1, 0
        %v931 = vsel %vm915, 1, 0
        %v932 = vsel %vm916, 1, 0
        %v933 = vcvt.s32.f32 %v917
        %v934 = vcvt.s32.f32 %v918
        %v935 = vcvt.s32.f32 %v919
        %v936 = vcvt.s32.f32 %v920
        %v937 = vcvt.s32.f32 %v921
        %v938 = vcvt.s32.f32 %v922
        %v939 = vcvt.s32.f32 %v923
        %v940 = vcvt.s32.f32 %v924
        %v941 = vcvt.s32.f32 %v925
        %v942 = vcvt.s32.f32 %v926
        %v943 = vcvt.s32.f32 %v927
        %v944 = vcvt.s32.f32 %v928
        %v945 = vcvt.s32.f32 %v929
        %v946 = vcvt.s32.f32 %v930
        %v947 = vcvt.s32.f32 %v931
        %v948 = vcvt.s32.f32 %v932
        %v949 = vld [vmem:[#allocation2 + $0x18] sm:$0xff]
        %v950 = vld [vmem:[#allocation2 + $0x58] sm:$0xff]
        %v951 = vld [vmem:[#allocation2 + $0x98] sm:$0xff]
        %v952 = vld [vmem:[#allocation2 + $0xd8] sm:$0xff]
        %953 = vmatprep.subr.mxu0 0.0
        %954 = vmatpush1.msra.mxu0 %v933
        %955 = vmatprep.subr.mxu0 0.0
        %956 = vmatpush1.msra.mxu0 %v934
        %957 = vmatprep.subr.mxu0 0.0
        %958 = vmatpush1.msra.mxu0 %v935
        %959 = vmatprep.subr.mxu0 0.0
        %960 = vmatpush1.msra.mxu0 %v936
        %961 = vmatprep.subr.mxu0 0.0
        %962 = vmatpush1.msra.mxu0 %v937
        %963 = vmatprep.subr.mxu0 0.0
        %964 = vmatpush1.msra.mxu0 %v938
        %965 = vmatprep.subr.mxu0 0.0
        %966 = vmatpush1.msra.mxu0 %v939
        %967 = vmatprep.subr.mxu0 0.0
        %968 = vmatpush1.msra.mxu0 %v940
        %969 = vmatprep.subr.mxu0 0.0
        %970 = vmatpush1.msra.mxu0 %v941
        %971 = vmatprep.subr.mxu0 0.0
        %972 = vmatpush1.msra.mxu0 %v942
        %973 = vmatprep.subr.mxu0 0.0
        %974 = vmatpush1.msra.mxu0 %v943
        %975 = vmatprep.subr.mxu0 0.0
        %976 = vmatpush1.msra.mxu0 %v944
        %977 = vmatprep.subr.mxu0 0.0
        %978 = vmatpush1.msra.mxu0 %v945
        %979 = vmatprep.subr.mxu0 0.0
        %980 = vmatpush1.msra.mxu0 %v946
        %981 = vmatprep.subr.mxu0 0.0
        %982 = vmatpush1.msra.mxu0 %v947
        %983 = vmatprep.subr.mxu0 0.0
        %984 = vmatpush1.msra.mxu0 %v948
        %985 = vmatprep.subr.mxu0 0.0
        %986 = vmatpush1.msra.mxu0 0.0
        %987 = vmatprep.subr.mxu0 0.0
        %988 = vmatpush1.msra.mxu0 0.0
        %989 = vmatprep.subr.mxu0 0.0
        %990 = vmatpush1.msra.mxu0 0.0
        %991 = vmatprep.subr.mxu0 0.0
        %992 = vmatpush1.msra.mxu0 0.0
        %993 = vmatprep.subr.mxu0 0.0
        %994 = vmatpush1.msra.mxu0 0.0
        %995 = vmatprep.subr.mxu0 0.0
        %996 = vmatpush1.msra.mxu0 0.0
        %997 = vmatprep.subr.mxu0 0.0
        %998 = vmatpush1.msra.mxu0 0.0
        %999 = vmatprep.subr.mxu0 0.0
        %1000 = vmatpush1.msra.mxu0 0.0
        %1001 = vmatprep.subr.mxu0 0.0
        %1002 = vmatpush1.msra.mxu0 0.0
        %1003 = vmatprep.subr.mxu0 0.0
        %1004 = vmatpush1.msra.mxu0 0.0
        %1005 = vmatprep.subr.mxu0 0.0
        %1006 = vmatpush1.msra.mxu0 0.0
        %1007 = vmatprep.subr.mxu0 0.0
        %1008 = vmatpush1.msra.mxu0 0.0
        %1009 = vmatprep.subr.mxu0 0.0
        %1010 = vmatpush1.msra.mxu0 0.0
        %1011 = vmatprep.subr.mxu0 0.0
        %1012 = vmatpush1.msra.mxu0 0.0
        %1013 = vmatprep.subr.mxu0 0.0
        %1014 = vmatpush1.msra.mxu0 0.0
        %1015 = vmatprep.subr.mxu0 0.0
        %1016 = vmatpush1.msra.mxu0 0.0
        %1017 = vmatprep.mubr.f32.mxu0 0.0
        %1018 = vmatmul.mubr.f32.gmra.mrb[0].mxu0 %v428
        %v1019 = vpop.f32.mrb[0].mxu0
        %v1020 = vadd.f32 0.0, %v1019
        %v1021 = vpop.f32.mrb[0].mxu0
        %1022 = vmatprep.mubr.f32.mxu0 0.0
        %1023 = vmatmul.mubr.f32.gmra.mrb[0].mxu0 %v429
        %v1024 = vpop.f32.mrb[0].mxu0
        %v1025 = vadd.f32 0.0, %v1024
        %v1026 = vpop.f32.mrb[0].mxu0
        %1027 = vmatprep.mubr.f32.mxu0 0.0
        %1028 = vmatmul.mubr.f32.gmra.mrb[0].mxu0 %v430
        %v1029 = vpop.f32.mrb[0].mxu0
        %v1030 = vadd.f32 0.0, %v1029
        %v1031 = vpop.f32.mrb[0].mxu0
        %1032 = vmatprep.mubr.f32.mxu0 0.0
        %1033 = vmatmul.mubr.f32.gmra.mrb[0].mxu0 %v431
        %v1034 = vpop.f32.mrb[0].mxu0
        %v1035 = vadd.f32 0.0, %v1034
        %v1036 = vpop.f32.mrb[0].mxu0
        %1037 = vdwg.mxu0
        %v1038 = vadd.f32 %v949, %v1020
        %v1039 = vadd.f32 %v950, %v1025
        %v1040 = vadd.f32 %v951, %v1030
        %v1041 = vadd.f32 %v952, %v1035
        %1042 = vst [vmem:[#allocation2 + $0x18] sm:$0xff] %v1038
        %1043 = vst [vmem:[#allocation2 + $0x58] sm:$0xff] %v1039
        %1044 = vst [vmem:[#allocation2 + $0x98] sm:$0xff] %v1040
        %1045 = vst [vmem:[#allocation2 + $0xd8] sm:$0xff] %v1041
        %v1046 = vlaneseq
        %v1047 = vshrl.u32 %v1046, 7
        %v1048 = vsub.s32 4, %v1047
        %v1049 = vrot.slane %v434, %v1048
        %vm1050 = vcmp.eq.s32.totalorder %v293, %v1049
        %vm1051 = vcmp.eq.s32.totalorder %v435, %v1049
        %vm1052 = vcmp.eq.s32.totalorder %v436, %v1049
        %vm1053 = vcmp.eq.s32.totalorder %v437, %v1049
        %vm1054 = vcmp.eq.s32.totalorder %v438, %v1049
        %vm1055 = vcmp.eq.s32.totalorder %v439, %v1049
        %vm1056 = vcmp.eq.s32.totalorder %v440, %v1049
        %vm1057 = vcmp.eq.s32.totalorder %v441, %v1049
        %vm1058 = vcmp.eq.s32.totalorder %v442, %v1049
        %vm1059 = vcmp.eq.s32.totalorder %v443, %v1049
        %vm1060 = vcmp.eq.s32.totalorder %v444, %v1049
        %vm1061 = vcmp.eq.s32.totalorder %v445, %v1049
        %vm1062 = vcmp.eq.s32.totalorder %v446, %v1049
        %vm1063 = vcmp.eq.s32.totalorder %v447, %v1049
        %vm1064 = vcmp.eq.s32.totalorder %v448, %v1049
        %vm1065 = vcmp.eq.s32.totalorder %v449, %v1049
        %v1066 = vsel %vm1050, 1, 0
        %v1067 = vsel %vm1051, 1, 0
        %v1068 = vsel %vm1052, 1, 0
        %v1069 = vsel %vm1053, 1, 0
        %v1070 = vsel %vm1054, 1, 0
        %v1071 = vsel %vm1055, 1, 0
        %v1072 = vsel %vm1056, 1, 0
        %v1073 = vsel %vm1057, 1, 0
        %v1074 = vsel %vm1058, 1, 0
        %v1075 = vsel %vm1059, 1, 0
        %v1076 = vsel %vm1060, 1, 0
        %v1077 = vsel %vm1061, 1, 0
        %v1078 = vsel %vm1062, 1, 0
        %v1079 = vsel %vm1063, 1, 0
        %v1080 = vsel %vm1064, 1, 0
        %v1081 = vsel %vm1065, 1, 0
        %v1082 = vcvt.s32.f32 %v1066
        %v1083 = vcvt.s32.f32 %v1067
        %v1084 = vcvt.s32.f32 %v1068
        %v1085 = vcvt.s32.f32 %v1069
        %v1086 = vcvt.s32.f32 %v1070
        %v1087 = vcvt.s32.f32 %v1071
        %v1088 = vcvt.s32.f32 %v1072
        %v1089 = vcvt.s32.f32 %v1073
        %v1090 = vcvt.s32.f32 %v1074
        %v1091 = vcvt.s32.f32 %v1075
        %v1092 = vcvt.s32.f32 %v1076
        %v1093 = vcvt.s32.f32 %v1077
        %v1094 = vcvt.s32.f32 %v1078
        %v1095 = vcvt.s32.f32 %v1079
        %v1096 = vcvt.s32.f32 %v1080
        %v1097 = vcvt.s32.f32 %v1081
        %v1098 = vld [vmem:[#allocation2 + $0x20] sm:$0xff]
        %v1099 = vld [vmem:[#allocation2 + $0x60] sm:$0xff]
        %v1100 = vld [vmem:[#allocation2 + $0xa0] sm:$0xff]
        %v1101 = vld [vmem:[#allocation2 + $0xe0] sm:$0xff]
        %1102 = vmatprep.subr.mxu0 0.0
        %1103 = vmatpush1.msra.mxu0 %v1082
        %1104 = vmatprep.subr.mxu0 0.0
        %1105 = vmatpush1.msra.mxu0 %v1083
        %1106 = vmatprep.subr.mxu0 0.0
        %1107 = vmatpush1.msra.mxu0 %v1084
        %1108 = vmatprep.subr.mxu0 0.0
        %1109 = vmatpush1.msra.mxu0 %v1085
        %1110 = vmatprep.subr.mxu0 0.0
        %1111 = vmatpush1.msra.mxu0 %v1086
        %1112 = vmatprep.subr.mxu0 0.0
        %1113 = vmatpush1.msra.mxu0 %v1087
        %1114 = vmatprep.subr.mxu0 0.0
        %1115 = vmatpush1.msra.mxu0 %v1088
        %1116 = vmatprep.subr.mxu0 0.0
        %1117 = vmatpush1.msra.mxu0 %v1089
        %1118 = vmatprep.subr.mxu0 0.0
        %1119 = vmatpush1.msra.mxu0 %v1090
        %1120 = vmatprep.subr.mxu0 0.0
        %1121 = vmatpush1.msra.mxu0 %v1091
        %1122 = vmatprep.subr.mxu0 0.0
        %1123 = vmatpush1.msra.mxu0 %v1092
        %1124 = vmatprep.subr.mxu0 0.0
        %1125 = vmatpush1.msra.mxu0 %v1093
        %1126 = vmatprep.subr.mxu0 0.0
        %1127 = vmatpush1.msra.mxu0 %v1094
        %1128 = vmatprep.subr.mxu0 0.0
        %1129 = vmatpush1.msra.mxu0 %v1095
        %1130 = vmatprep.subr.mxu0 0.0
        %1131 = vmatpush1.msra.mxu0 %v1096
        %1132 = vmatprep.subr.mxu0 0.0
        %1133 = vmatpush1.msra.mxu0 %v1097
        %1134 = vmatprep.subr.mxu0 0.0
        %1135 = vmatpush1.msra.mxu0 0.0
        %1136 = vmatprep.subr.mxu0 0.0
        %1137 = vmatpush1.msra.mxu0 0.0
        %1138 = vmatprep.subr.mxu0 0.0
        %1139 = vmatpush1.msra.mxu0 0.0
        %1140 = vmatprep.subr.mxu0 0.0
        %1141 = vmatpush1.msra.mxu0 0.0
        %1142 = vmatprep.subr.mxu0 0.0
        %1143 = vmatpush1.msra.mxu0 0.0
        %1144 = vmatprep.subr.mxu0 0.0
        %1145 = vmatpush1.msra.mxu0 0.0
        %1146 = vmatprep.subr.mxu0 0.0
        %1147 = vmatpush1.msra.mxu0 0.0
        %1148 = vmatprep.subr.mxu0 0.0
        %1149 = vmatpush1.msra.mxu0 0.0
        %1150 = vmatprep.subr.mxu0 0.0
        %1151 = vmatpush1.msra.mxu0 0.0
        %1152 = vmatprep.subr.mxu0 0.0
        %1153 = vmatpush1.msra.mxu0 0.0
        %1154 = vmatprep.subr.mxu0 0.0
        %1155 = vmatpush1.msra.mxu0 0.0
        %1156 = vmatprep.subr.mxu0 0.0
        %1157 = vmatpush1.msra.mxu0 0.0
        %1158 = vmatprep.subr.mxu0 0.0
        %1159 = vmatpush1.msra.mxu0 0.0
        %1160 = vmatprep.subr.mxu0 0.0
        %1161 = vmatpush1.msra.mxu0 0.0
        %1162 = vmatprep.subr.mxu0 0.0
        %1163 = vmatpush1.msra.mxu0 0.0
        %1164 = vmatprep.subr.mxu0 0.0
        %1165 = vmatpush1.msra.mxu0 0.0
        %1166 = vmatprep.mubr.f32.mxu0 0.0
        %1167 = vmatmul.mubr.f32.gmra.mrb[0].mxu0 %v428
        %v1168 = vpop.f32.mrb[0].mxu0
        %v1169 = vadd.f32 0.0, %v1168
        %v1170 = vpop.f32.mrb[0].mxu0
        %1171 = vmatprep.mubr.f32.mxu0 0.0
        %1172 = vmatmul.mubr.f32.gmra.mrb[0].mxu0 %v429
        %v1173 = vpop.f32.mrb[0].mxu0
        %v1174 = vadd.f32 0.0, %v1173
        %v1175 = vpop.f32.mrb[0].mxu0
        %1176 = vmatprep.mubr.f32.mxu0 0.0
        %1177 = vmatmul.mubr.f32.gmra.mrb[0].mxu0 %v430
        %v1178 = vpop.f32.mrb[0].mxu0
        %v1179 = vadd.f32 0.0, %v1178
        %v1180 = vpop.f32.mrb[0].mxu0
        %1181 = vmatprep.mubr.f32.mxu0 0.0
        %1182 = vmatmul.mubr.f32.gmra.mrb[0].mxu0 %v431
        %v1183 = vpop.f32.mrb[0].mxu0
        %v1184 = vadd.f32 0.0, %v1183
        %v1185 = vpop.f32.mrb[0].mxu0
        %1186 = vdwg.mxu0
        %v1187 = vadd.f32 %v1098, %v1169
        %v1188 = vadd.f32 %v1099, %v1174
        %v1189 = vadd.f32 %v1100, %v1179
        %v1190 = vadd.f32 %v1101, %v1184
        %1191 = vst [vmem:[#allocation2 + $0x20] sm:$0xff] %v1187
        %1192 = vst [vmem:[#allocation2 + $0x60] sm:$0xff] %v1188
        %1193 = vst [vmem:[#allocation2 + $0xa0] sm:$0xff] %v1189
        %1194 = vst [vmem:[#allocation2 + $0xe0] sm:$0xff] %v1190
        %v1195 = vlaneseq
        %v1196 = vshrl.u32 %v1195, 7
        %v1197 = vsub.s32 5, %v1196
        %v1198 = vrot.slane %v434, %v1197
        %vm1199 = vcmp.eq.s32.totalorder %v293, %v1198
        %vm1200 = vcmp.eq.s32.totalorder %v435, %v1198
        %vm1201 = vcmp.eq.s32.totalorder %v436, %v1198
        %vm1202 = vcmp.eq.s32.totalorder %v437, %v1198
        %vm1203 = vcmp.eq.s32.totalorder %v438, %v1198
        %vm1204 = vcmp.eq.s32.totalorder %v439, %v1198
        %vm1205 = vcmp.eq.s32.totalorder %v440, %v1198
        %vm1206 = vcmp.eq.s32.totalorder %v441, %v1198
        %vm1207 = vcmp.eq.s32.totalorder %v442, %v1198
        %vm1208 = vcmp.eq.s32.totalorder %v443, %v1198
        %vm1209 = vcmp.eq.s32.totalorder %v444, %v1198
        %vm1210 = vcmp.eq.s32.totalorder %v445, %v1198
        %vm1211 = vcmp.eq.s32.totalorder %v446, %v1198
        %vm1212 = vcmp.eq.s32.totalorder %v447, %v1198
        %vm1213 = vcmp.eq.s32.totalorder %v448, %v1198
        %vm1214 = vcmp.eq.s32.totalorder %v449, %v1198
        %v1215 = vsel %vm1199, 1, 0
        %v1216 = vsel %vm1200, 1, 0
        %v1217 = vsel %vm1201, 1, 0
        %v1218 = vsel %vm1202, 1, 0
        %v1219 = vsel %vm1203, 1, 0
        %v1220 = vsel %vm1204, 1, 0
        %v1221 = vsel %vm1205, 1, 0
        %v1222 = vsel %vm1206, 1, 0
        %v1223 = vsel %vm1207, 1, 0
        %v1224 = vsel %vm1208, 1, 0
        %v1225 = vsel %vm1209, 1, 0
        %v1226 = vsel %vm1210, 1, 0
        %v1227 = vsel %vm1211, 1, 0
        %v1228 = vsel %vm1212, 1, 0
        %v1229 = vsel %vm1213, 1, 0
        %v1230 = vsel %vm1214, 1, 0
        %v1231 = vcvt.s32.f32 %v1215
        %v1232 = vcvt.s32.f32 %v1216
        %v1233 = vcvt.s32.f32 %v1217
        %v1234 = vcvt.s32.f32 %v1218
        %v1235 = vcvt.s32.f32 %v1219
        %v1236 = vcvt.s32.f32 %v1220
        %v1237 = vcvt.s32.f32 %v1221
        %v1238 = vcvt.s32.f32 %v1222
        %v1239 = vcvt.s32.f32 %v1223
        %v1240 = vcvt.s32.f32 %v1224
        %v1241 = vcvt.s32.f32 %v1225
        %v1242 = vcvt.s32.f32 %v1226
        %v1243 = vcvt.s32.f32 %v1227
        %v1244 = vcvt.s32.f32 %v1228
        %v1245 = vcvt.s32.f32 %v1229
        %v1246 = vcvt.s32.f32 %v1230
        %v1247 = vld [vmem:[#allocation2 + $0x28] sm:$0xff]
        %v1248 = vld [vmem:[#allocation2 + $0x68] sm:$0xff]
        %v1249 = vld [vmem:[#allocation2 + $0xa8] sm:$0xff]
        %v1250 = vld [vmem:[#allocation2 + $0xe8] sm:$0xff]
        %1251 = vmatprep.subr.mxu0 0.0
        %1252 = vmatpush1.msra.mxu0 %v1231
        %1253 = vmatprep.subr.mxu0 0.0
        %1254 = vmatpush1.msra.mxu0 %v1232
        %1255 = vmatprep.subr.mxu0 0.0
        %1256 = vmatpush1.msra.mxu0 %v1233
        %1257 = vmatprep.subr.mxu0 0.0
        %1258 = vmatpush1.msra.mxu0 %v1234
        %1259 = vmatprep.subr.mxu0 0.0
        %1260 = vmatpush1.msra.mxu0 %v1235
        %1261 = vmatprep.subr.mxu0 0.0
        %1262 = vmatpush1.msra.mxu0 %v1236
        %1263 = vmatprep.subr.mxu0 0.0
        %1264 = vmatpush1.msra.mxu0 %v1237
        %1265 = vmatprep.subr.mxu0 0.0
        %1266 = vmatpush1.msra.mxu0 %v1238
        %1267 = vmatprep.subr.mxu0 0.0
        %1268 = vmatpush1.msra.mxu0 %v1239
        %1269 = vmatprep.subr.mxu0 0.0
        %1270 = vmatpush1.msra.mxu0 %v1240
        %1271 = vmatprep.subr.mxu0 0.0
        %1272 = vmatpush1.msra.mxu0 %v1241
        %1273 = vmatprep.subr.mxu0 0.0
        %1274 = vmatpush1.msra.mxu0 %v1242
        %1275 = vmatprep.subr.mxu0 0.0
        %1276 = vmatpush1.msra.mxu0 %v1243
        %1277 = vmatprep.subr.mxu0 0.0
        %1278 = vmatpush1.msra.mxu0 %v1244
        %1279 = vmatprep.subr.mxu0 0.0
        %1280 = vmatpush1.msra.mxu0 %v1245
        %1281 = vmatprep.subr.mxu0 0.0
        %1282 = vmatpush1.msra.mxu0 %v1246
        %1283 = vmatprep.subr.mxu0 0.0
        %1284 = vmatpush1.msra.mxu0 0.0
        %1285 = vmatprep.subr.mxu0 0.0
        %1286 = vmatpush1.msra.mxu0 0.0
        %1287 = vmatprep.subr.mxu0 0.0
        %1288 = vmatpush1.msra.mxu0 0.0
        %1289 = vmatprep.subr.mxu0 0.0
        %1290 = vmatpush1.msra.mxu0 0.0
        %1291 = vmatprep.subr.mxu0 0.0
        %1292 = vmatpush1.msra.mxu0 0.0
        %1293 = vmatprep.subr.mxu0 0.0
        %1294 = vmatpush1.msra.mxu0 0.0
        %1295 = vmatprep.subr.mxu0 0.0
        %1296 = vmatpush1.msra.mxu0 0.0
        %1297 = vmatprep.subr.mxu0 0.0
        %1298 = vmatpush1.msra.mxu0 0.0
        %1299 = vmatprep.subr.mxu0 0.0
        %1300 = vmatpush1.msra.mxu0 0.0
        %1301 = vmatprep.subr.mxu0 0.0
        %1302 = vmatpush1.msra.mxu0 0.0
        %1303 = vmatprep.subr.mxu0 0.0
        %1304 = vmatpush1.msra.mxu0 0.0
        %1305 = vmatprep.subr.mxu0 0.0
        %1306 = vmatpush1.msra.mxu0 0.0
        %1307 = vmatprep.subr.mxu0 0.0
        %1308 = vmatpush1.msra.mxu0 0.0
        %1309 = vmatprep.subr.mxu0 0.0
        %1310 = vmatpush1.msra.mxu0 0.0
        %1311 = vmatprep.subr.mxu0 0.0
        %1312 = vmatpush1.msra.mxu0 0.0
        %1313 = vmatprep.subr.mxu0 0.0
        %1314 = vmatpush1.msra.mxu0 0.0
        %1315 = vmatprep.mubr.f32.mxu0 0.0
        %1316 = vmatmul.mubr.f32.gmra.mrb[0].mxu0 %v428
        %v1317 = vpop.f32.mrb[0].mxu0
        %v1318 = vadd.f32 0.0, %v1317
        %v1319 = vpop.f32.mrb[0].mxu0
        %1320 = vmatprep.mubr.f32.mxu0 0.0
        %1321 = vmatmul.mubr.f32.gmra.mrb[0].mxu0 %v429
        %v1322 = vpop.f32.mrb[0].mxu0
        %v1323 = vadd.f32 0.0, %v1322
        %v1324 = vpop.f32.mrb[0].mxu0
        %1325 = vmatprep.mubr.f32.mxu0 0.0
        %1326 = vmatmul.mubr.f32.gmra.mrb[0].mxu0 %v430
        %v1327 = vpop.f32.mrb[0].mxu0
        %v1328 = vadd.f32 0.0, %v1327
        %v1329 = vpop.f32.mrb[0].mxu0
        %1330 = vmatprep.mubr.f32.mxu0 0.0
        %1331 = vmatmul.mubr.f32.gmra.mrb[0].mxu0 %v431
        %v1332 = vpop.f32.mrb[0].mxu0
        %v1333 = vadd.f32 0.0, %v1332
        %v1334 = vpop.f32.mrb[0].mxu0
        %1335 = vdwg.mxu0
        %v1336 = vadd.f32 %v1247, %v1318
        %v1337 = vadd.f32 %v1248, %v1323
        %v1338 = vadd.f32 %v1249, %v1328
        %v1339 = vadd.f32 %v1250, %v1333
        %1340 = vst [vmem:[#allocation2 + $0x28] sm:$0xff] %v1336
        %1341 = vst [vmem:[#allocation2 + $0x68] sm:$0xff] %v1337
        %1342 = vst [vmem:[#allocation2 + $0xa8] sm:$0xff] %v1338
        %1343 = vst [vmem:[#allocation2 + $0xe8] sm:$0xff] %v1339
        %v1344 = vlaneseq
        %v1345 = vshrl.u32 %v1344, 7
        %v1346 = vsub.s32 6, %v1345
        %v1347 = vrot.slane %v434, %v1346
        %vm1348 = vcmp.eq.s32.totalorder %v293, %v1347
        %vm1349 = vcmp.eq.s32.totalorder %v435, %v1347
        %vm1350 = vcmp.eq.s32.totalorder %v436, %v1347
        %vm1351 = vcmp.eq.s32.totalorder %v437, %v1347
        %vm1352 = vcmp.eq.s32.totalorder %v438, %v1347
        %vm1353 = vcmp.eq.s32.totalorder %v439, %v1347
        %vm1354 = vcmp.eq.s32.totalorder %v440, %v1347
        %vm1355 = vcmp.eq.s32.totalorder %v441, %v1347
        %vm1356 = vcmp.eq.s32.totalorder %v442, %v1347
        %vm1357 = vcmp.eq.s32.totalorder %v443, %v1347
        %vm1358 = vcmp.eq.s32.totalorder %v444, %v1347
        %vm1359 = vcmp.eq.s32.totalorder %v445, %v1347
        %vm1360 = vcmp.eq.s32.totalorder %v446, %v1347
        %vm1361 = vcmp.eq.s32.totalorder %v447, %v1347
        %vm1362 = vcmp.eq.s32.totalorder %v448, %v1347
        %vm1363 = vcmp.eq.s32.totalorder %v449, %v1347
        %v1364 = vsel %vm1348, 1, 0
        %v1365 = vsel %vm1349, 1, 0
        %v1366 = vsel %vm1350, 1, 0
        %v1367 = vsel %vm1351, 1, 0
        %v1368 = vsel %vm1352, 1, 0
        %v1369 = vsel %vm1353, 1, 0
        %v1370 = vsel %vm1354, 1, 0
        %v1371 = vsel %vm1355, 1, 0
        %v1372 = vsel %vm1356, 1, 0
        %v1373 = vsel %vm1357, 1, 0
        %v1374 = vsel %vm1358, 1, 0
        %v1375 = vsel %vm1359, 1, 0
        %v1376 = vsel %vm1360, 1, 0
        %v1377 = vsel %vm1361, 1, 0
        %v1378 = vsel %vm1362, 1, 0
        %v1379 = vsel %vm1363, 1, 0
        %v1380 = vcvt.s32.f32 %v1364
        %v1381 = vcvt.s32.f32 %v1365
        %v1382 = vcvt.s32.f32 %v1366
        %v1383 = vcvt.s32.f32 %v1367
        %v1384 = vcvt.s32.f32 %v1368
        %v1385 = vcvt.s32.f32 %v1369
        %v1386 = vcvt.s32.f32 %v1370
        %v1387 = vcvt.s32.f32 %v1371
        %v1388 = vcvt.s32.f32 %v1372
        %v1389 = vcvt.s32.f32 %v1373
        %v1390 = vcvt.s32.f32 %v1374
        %v1391 = vcvt.s32.f32 %v1375
        %v1392 = vcvt.s32.f32 %v1376
        %v1393 = vcvt.s32.f32 %v1377
        %v1394 = vcvt.s32.f32 %v1378
        %v1395 = vcvt.s32.f32 %v1379
        %v1396 = vld [vmem:[#allocation2 + $0x30] sm:$0xff]
        %v1397 = vld [vmem:[#allocation2 + $0x70] sm:$0xff]
        %v1398 = vld [vmem:[#allocation2 + $0xb0] sm:$0xff]
        %v1399 = vld [vmem:[#allocation2 + $0xf0] sm:$0xff]
        %1400 = vmatprep.subr.mxu0 0.0
        %1401 = vmatpush1.msra.mxu0 %v1380
        %1402 = vmatprep.subr.mxu0 0.0
        %1403 = vmatpush1.msra.mxu0 %v1381
        %1404 = vmatprep.subr.mxu0 0.0
        %1405 = vmatpush1.msra.mxu0 %v1382
        %1406 = vmatprep.subr.mxu0 0.0
        %1407 = vmatpush1.msra.mxu0 %v1383
        %1408 = vmatprep.subr.mxu0 0.0
        %1409 = vmatpush1.msra.mxu0 %v1384
        %1410 = vmatprep.subr.mxu0 0.0
        %1411 = vmatpush1.msra.mxu0 %v1385
        %1412 = vmatprep.subr.mxu0 0.0
        %1413 = vmatpush1.msra.mxu0 %v1386
        %1414 = vmatprep.subr.mxu0 0.0
        %1415 = vmatpush1.msra.mxu0 %v1387
        %1416 = vmatprep.subr.mxu0 0.0
        %1417 = vmatpush1.msra.mxu0 %v1388
        %1418 = vmatprep.subr.mxu0 0.0
        %1419 = vmatpush1.msra.mxu0 %v1389
        %1420 = vmatprep.subr.mxu0 0.0
        %1421 = vmatpush1.msra.mxu0 %v1390
        %1422 = vmatprep.subr.mxu0 0.0
        %1423 = vmatpush1.msra.mxu0 %v1391
        %1424 = vmatprep.subr.mxu0 0.0
        %1425 = vmatpush1.msra.mxu0 %v1392
        %1426 = vmatprep.subr.mxu0 0.0
        %1427 = vmatpush1.msra.mxu0 %v1393
        %1428 = vmatprep.subr.mxu0 0.0
        %1429 = vmatpush1.msra.mxu0 %v1394
        %1430 = vmatprep.subr.mxu0 0.0
        %1431 = vmatpush1.msra.mxu0 %v1395
        %1432 = vmatprep.subr.mxu0 0.0
        %1433 = vmatpush1.msra.mxu0 0.0
        %1434 = vmatprep.subr.mxu0 0.0
        %1435 = vmatpush1.msra.mxu0 0.0
        %1436 = vmatprep.subr.mxu0 0.0
        %1437 = vmatpush1.msra.mxu0 0.0
        %1438 = vmatprep.subr.mxu0 0.0
        %1439 = vmatpush1.msra.mxu0 0.0
        %1440 = vmatprep.subr.mxu0 0.0
        %1441 = vmatpush1.msra.mxu0 0.0
        %1442 = vmatprep.subr.mxu0 0.0
        %1443 = vmatpush1.msra.mxu0 0.0
        %1444 = vmatprep.subr.mxu0 0.0
        %1445 = vmatpush1.msra.mxu0 0.0
        %1446 = vmatprep.subr.mxu0 0.0
        %1447 = vmatpush1.msra.mxu0 0.0
        %1448 = vmatprep.subr.mxu0 0.0
        %1449 = vmatpush1.msra.mxu0 0.0
        %1450 = vmatprep.subr.mxu0 0.0
        %1451 = vmatpush1.msra.mxu0 0.0
        %1452 = vmatprep.subr.mxu0 0.0
        %1453 = vmatpush1.msra.mxu0 0.0
        %1454 = vmatprep.subr.mxu0 0.0
        %1455 = vmatpush1.msra.mxu0 0.0
        %1456 = vmatprep.subr.mxu0 0.0
        %1457 = vmatpush1.msra.mxu0 0.0
        %1458 = vmatprep.subr.mxu0 0.0
        %1459 = vmatpush1.msra.mxu0 0.0
        %1460 = vmatprep.subr.mxu0 0.0
        %1461 = vmatpush1.msra.mxu0 0.0
        %1462 = vmatprep.subr.mxu0 0.0
        %1463 = vmatpush1.msra.mxu0 0.0
        %1464 = vmatprep.mubr.f32.mxu0 0.0
        %1465 = vmatmul.mubr.f32.gmra.mrb[0].mxu0 %v428
        %v1466 = vpop.f32.mrb[0].mxu0
        %v1467 = vadd.f32 0.0, %v1466
        %v1468 = vpop.f32.mrb[0].mxu0
        %1469 = vmatprep.mubr.f32.mxu0 0.0
        %1470 = vmatmul.mubr.f32.gmra.mrb[0].mxu0 %v429
        %v1471 = vpop.f32.mrb[0].mxu0
        %v1472 = vadd.f32 0.0, %v1471
        %v1473 = vpop.f32.mrb[0].mxu0
        %1474 = vmatprep.mubr.f32.mxu0 0.0
        %1475 = vmatmul.mubr.f32.gmra.mrb[0].mxu0 %v430
        %v1476 = vpop.f32.mrb[0].mxu0
        %v1477 = vadd.f32 0.0, %v1476
        %v1478 = vpop.f32.mrb[0].mxu0
        %1479 = vmatprep.mubr.f32.mxu0 0.0
        %1480 = vmatmul.mubr.f32.gmra.mrb[0].mxu0 %v431
        %v1481 = vpop.f32.mrb[0].mxu0
        %v1482 = vadd.f32 0.0, %v1481
        %v1483 = vpop.f32.mrb[0].mxu0
        %1484 = vdwg.mxu0
        %v1485 = vadd.f32 %v1396, %v1467
        %v1486 = vadd.f32 %v1397, %v1472
        %v1487 = vadd.f32 %v1398, %v1477
        %v1488 = vadd.f32 %v1399, %v1482
        %1489 = vst [vmem:[#allocation2 + $0x30] sm:$0xff] %v1485
        %1490 = vst [vmem:[#allocation2 + $0x70] sm:$0xff] %v1486
        %1491 = vst [vmem:[#allocation2 + $0xb0] sm:$0xff] %v1487
        %1492 = vst [vmem:[#allocation2 + $0xf0] sm:$0xff] %v1488
        %v1493 = vlaneseq
        %v1494 = vshrl.u32 %v1493, 7
        %v1495 = vsub.s32 7, %v1494
        %v1496 = vrot.slane %v434, %v1495
        %vm1497 = vcmp.eq.s32.totalorder %v293, %v1496
        %vm1498 = vcmp.eq.s32.totalorder %v435, %v1496
        %vm1499 = vcmp.eq.s32.totalorder %v436, %v1496
        %vm1500 = vcmp.eq.s32.totalorder %v437, %v1496
        %vm1501 = vcmp.eq.s32.totalorder %v438, %v1496
        %vm1502 = vcmp.eq.s32.totalorder %v439, %v1496
        %vm1503 = vcmp.eq.s32.totalorder %v440, %v1496
        %vm1504 = vcmp.eq.s32.totalorder %v441, %v1496
        %vm1505 = vcmp.eq.s32.totalorder %v442, %v1496
        %vm1506 = vcmp.eq.s32.totalorder %v443, %v1496
        %vm1507 = vcmp.eq.s32.totalorder %v444, %v1496
        %vm1508 = vcmp.eq.s32.totalorder %v445, %v1496
        %vm1509 = vcmp.eq.s32.totalorder %v446, %v1496
        %vm1510 = vcmp.eq.s32.totalorder %v447, %v1496
        %vm1511 = vcmp.eq.s32.totalorder %v448, %v1496
        %vm1512 = vcmp.eq.s32.totalorder %v449, %v1496
        %v1513 = vsel %vm1497, 1, 0
        %v1514 = vsel %vm1498, 1, 0
        %v1515 = vsel %vm1499, 1, 0
        %v1516 = vsel %vm1500, 1, 0
        %v1517 = vsel %vm1501, 1, 0
        %v1518 = vsel %vm1502, 1, 0
        %v1519 = vsel %vm1503, 1, 0
        %v1520 = vsel %vm1504, 1, 0
        %v1521 = vsel %vm1505, 1, 0
        %v1522 = vsel %vm1506, 1, 0
        %v1523 = vsel %vm1507, 1, 0
        %v1524 = vsel %vm1508, 1, 0
        %v1525 = vsel %vm1509, 1, 0
        %v1526 = vsel %vm1510, 1, 0
        %v1527 = vsel %vm1511, 1, 0
        %v1528 = vsel %vm1512, 1, 0
        %v1529 = vcvt.s32.f32 %v1513
        %v1530 = vcvt.s32.f32 %v1514
        %v1531 = vcvt.s32.f32 %v1515
        %v1532 = vcvt.s32.f32 %v1516
        %v1533 = vcvt.s32.f32 %v1517
        %v1534 = vcvt.s32.f32 %v1518
        %v1535 = vcvt.s32.f32 %v1519
        %v1536 = vcvt.s32.f32 %v1520
        %v1537 = vcvt.s32.f32 %v1521
        %v1538 = vcvt.s32.f32 %v1522
        %v1539 = vcvt.s32.f32 %v1523
        %v1540 = vcvt.s32.f32 %v1524
        %v1541 = vcvt.s32.f32 %v1525
        %v1542 = vcvt.s32.f32 %v1526
        %v1543 = vcvt.s32.f32 %v1527
        %v1544 = vcvt.s32.f32 %v1528
        %v1545 = vld [vmem:[#allocation2 + $0x38] sm:$0xff]
        %v1546 = vld [vmem:[#allocation2 + $0x78] sm:$0xff]
        %v1547 = vld [vmem:[#allocation2 + $0xb8] sm:$0xff]
        %v1548 = vld [vmem:[#allocation2 + $0xf8] sm:$0xff]
        %1549 = vmatprep.subr.mxu0 0.0
        %1550 = vmatpush1.msra.mxu0 %v1529
        %1551 = vmatprep.subr.mxu0 0.0
        %1552 = vmatpush1.msra.mxu0 %v1530
        %1553 = vmatprep.subr.mxu0 0.0
        %1554 = vmatpush1.msra.mxu0 %v1531
        %1555 = vmatprep.subr.mxu0 0.0
        %1556 = vmatpush1.msra.mxu0 %v1532
        %1557 = vmatprep.subr.mxu0 0.0
        %1558 = vmatpush1.msra.mxu0 %v1533
        %1559 = vmatprep.subr.mxu0 0.0
        %1560 = vmatpush1.msra.mxu0 %v1534
        %1561 = vmatprep.subr.mxu0 0.0
        %1562 = vmatpush1.msra.mxu0 %v1535
        %1563 = vmatprep.subr.mxu0 0.0
        %1564 = vmatpush1.msra.mxu0 %v1536
        %1565 = vmatprep.subr.mxu0 0.0
        %1566 = vmatpush1.msra.mxu0 %v1537
        %1567 = vmatprep.subr.mxu0 0.0
        %1568 = vmatpush1.msra.mxu0 %v1538
        %1569 = vmatprep.subr.mxu0 0.0
        %1570 = vmatpush1.msra.mxu0 %v1539
        %1571 = vmatprep.subr.mxu0 0.0
        %1572 = vmatpush1.msra.mxu0 %v1540
        %1573 = vmatprep.subr.mxu0 0.0
        %1574 = vmatpush1.msra.mxu0 %v1541
        %1575 = vmatprep.subr.mxu0 0.0
        %1576 = vmatpush1.msra.mxu0 %v1542
        %1577 = vmatprep.subr.mxu0 0.0
        %1578 = vmatpush1.msra.mxu0 %v1543
        %1579 = vmatprep.subr.mxu0 0.0
        %1580 = vmatpush1.msra.mxu0 %v1544
        %1581 = vmatprep.subr.mxu0 0.0
        %1582 = vmatpush1.msra.mxu0 0.0
        %1583 = vmatprep.subr.mxu0 0.0
        %1584 = vmatpush1.msra.mxu0 0.0
        %1585 = vmatprep.subr.mxu0 0.0
        %1586 = vmatpush1.msra.mxu0 0.0
        %1587 = vmatprep.subr.mxu0 0.0
        %1588 = vmatpush1.msra.mxu0 0.0
        %1589 = vmatprep.subr.mxu0 0.0
        %1590 = vmatpush1.msra.mxu0 0.0
        %1591 = vmatprep.subr.mxu0 0.0
        %1592 = vmatpush1.msra.mxu0 0.0
        %1593 = vmatprep.subr.mxu0 0.0
        %1594 = vmatpush1.msra.mxu0 0.0
        %1595 = vmatprep.subr.mxu0 0.0
        %1596 = vmatpush1.msra.mxu0 0.0
        %1597 = vmatprep.subr.mxu0 0.0
        %1598 = vmatpush1.msra.mxu0 0.0
        %1599 = vmatprep.subr.mxu0 0.0
        %1600 = vmatpush1.msra.mxu0 0.0
        %1601 = vmatprep.subr.mxu0 0.0
        %1602 = vmatpush1.msra.mxu0 0.0
        %1603 = vmatprep.subr.mxu0 0.0
        %1604 = vmatpush1.msra.mxu0 0.0
        %1605 = vmatprep.subr.mxu0 0.0
        %1606 = vmatpush1.msra.mxu0 0.0
        %1607 = vmatprep.subr.mxu0 0.0
        %1608 = vmatpush1.msra.mxu0 0.0
        %1609 = vmatprep.subr.mxu0 0.0
        %1610 = vmatpush1.msra.mxu0 0.0
        %1611 = vmatprep.subr.mxu0 0.0
        %1612 = vmatpush1.msra.mxu0 0.0
        %1613 = vmatprep.mubr.f32.mxu0 0.0
        %1614 = vmatmul.mubr.f32.gmra.mrb[0].mxu0 %v428
        %v1615 = vpop.f32.mrb[0].mxu0
        %v1616 = vadd.f32 0.0, %v1615
        %v1617 = vpop.f32.mrb[0].mxu0
        %1618 = vmatprep.mubr.f32.mxu0 0.0
        %1619 = vmatmul.mubr.f32.gmra.mrb[0].mxu0 %v429
        %v1620 = vpop.f32.mrb[0].mxu0
        %v1621 = vadd.f32 0.0, %v1620
        %v1622 = vpop.f32.mrb[0].mxu0
        %1623 = vmatprep.mubr.f32.mxu0 0.0
        %1624 = vmatmul.mubr.f32.gmra.mrb[0].mxu0 %v430
        %v1625 = vpop.f32.mrb[0].mxu0
        %v1626 = vadd.f32 0.0, %v1625
        %v1627 = vpop.f32.mrb[0].mxu0
        %1628 = vmatprep.mubr.f32.mxu0 0.0
        %1629 = vmatmul.mubr.f32.gmra.mrb[0].mxu0 %v431
        %v1630 = vpop.f32.mrb[0].mxu0
        %v1631 = vadd.f32 0.0, %v1630
        %v1632 = vpop.f32.mrb[0].mxu0
        %1633 = vdwg.mxu0
        %v1634 = vadd.f32 %v1545, %v1616
        %v1635 = vadd.f32 %v1546, %v1621
        %v1636 = vadd.f32 %v1547, %v1626
        %v1637 = vadd.f32 %v1548, %v1631
        %1638 = vst [vmem:[#allocation2 + $0x38] sm:$0xff] %v1634
        %1639 = vst [vmem:[#allocation2 + $0x78] sm:$0xff] %v1635
        %1640 = vst [vmem:[#allocation2 + $0xb8] sm:$0xff] %v1636
        %1641 = vst [vmem:[#allocation2 + $0xf8] sm:$0xff] %v1637
        // Predicated region
        $region37: #{tpu_custom_call.1} parent=27 // pred_check
          %p1642 = pneg %p329
        $region38: #{tpu_custom_call.1} parent=27 // pred_check_branch
          %1644 = sbr.rel (%p1642) target = $region40
        $region39: #{tpu_custom_call.1} parent=27 // pred_region
          %v1645 = vld [vmem:[#allocation2] sm:$0xff]
          %v1646 = vld [vmem:[#allocation2 + $0x8] sm:$0xff]
          %v1647 = vld [vmem:[#allocation2 + $0x10] sm:$0xff]
          %v1648 = vld [vmem:[#allocation2 + $0x18] sm:$0xff]
          %v1649 = vld [vmem:[#allocation2 + $0x20] sm:$0xff]
          %v1650 = vld [vmem:[#allocation2 + $0x28] sm:$0xff]
          %v1651 = vld [vmem:[#allocation2 + $0x30] sm:$0xff]
          %v1652 = vld [vmem:[#allocation2 + $0x38] sm:$0xff]
          %v1653 = vld [vmem:[#allocation2 + $0x40] sm:$0xff]
          %v1654 = vld [vmem:[#allocation2 + $0x48] sm:$0xff]
          %v1655 = vld [vmem:[#allocation2 + $0x50] sm:$0xff]
          %v1656 = vld [vmem:[#allocation2 + $0x58] sm:$0xff]
          %v1657 = vld [vmem:[#allocation2 + $0x60] sm:$0xff]
          %v1658 = vld [vmem:[#allocation2 + $0x68] sm:$0xff]
          %v1659 = vld [vmem:[#allocation2 + $0x70] sm:$0xff]
          %v1660 = vld [vmem:[#allocation2 + $0x78] sm:$0xff]
          %v1661 = vld [vmem:[#allocation2 + $0x80] sm:$0xff]
          %v1662 = vld [vmem:[#allocation2 + $0x88] sm:$0xff]
          %v1663 = vld [vmem:[#allocation2 + $0x90] sm:$0xff]
          %v1664 = vld [vmem:[#allocation2 + $0x98] sm:$0xff]
          %v1665 = vld [vmem:[#allocation2 + $0xa0] sm:$0xff]
          %v1666 = vld [vmem:[#allocation2 + $0xa8] sm:$0xff]
          %v1667 = vld [vmem:[#allocation2 + $0xb0] sm:$0xff]
          %v1668 = vld [vmem:[#allocation2 + $0xb8] sm:$0xff]
          %v1669 = vld [vmem:[#allocation2 + $0xc0] sm:$0xff]
          %v1670 = vld [vmem:[#allocation2 + $0xc8] sm:$0xff]
          %v1671 = vld [vmem:[#allocation2 + $0xd0] sm:$0xff]
          %v1672 = vld [vmem:[#allocation2 + $0xd8] sm:$0xff]
          %v1673 = vld [vmem:[#allocation2 + $0xe0] sm:$0xff]
          %v1674 = vld [vmem:[#allocation2 + $0xe8] sm:$0xff]
          %v1675 = vld [vmem:[#allocation2 + $0xf0] sm:$0xff]
          %v1676 = vld [vmem:[#allocation2 + $0xf8] sm:$0xff]
          %1677 = vst [vmem:[%s268] sm:$0xff] %v1645
          %1678 = vst [vmem:[%s268 + $0x8] sm:$0xff] %v1646
          %1679 = vst [vmem:[%s268 + $0x10] sm:$0xff] %v1647
          %1680 = vst [vmem:[%s268 + $0x18] sm:$0xff] %v1648
          %1681 = vst [vmem:[%s268 + $0x20] sm:$0xff] %v1649
          %1682 = vst [vmem:[%s268 + $0x28] sm:$0xff] %v1650
          %1683 = vst [vmem:[%s268 + $0x30] sm:$0xff] %v1651
          %1684 = vst [vmem:[%s268 + $0x38] sm:$0xff] %v1652
          %1685 = vst [vmem:[%s268 + $0x40] sm:$0xff] %v1653
          %1686 = vst [vmem:[%s268 + $0x48] sm:$0xff] %v1654
          %1687 = vst [vmem:[%s268 + $0x50] sm:$0xff] %v1655
          %1688 = vst [vmem:[%s268 + $0x58] sm:$0xff] %v1656
          %1689 = vst [vmem:[%s268 + $0x60] sm:$0xff] %v1657
          %1690 = vst [vmem:[%s268 + $0x68] sm:$0xff] %v1658
          %1691 = vst [vmem:[%s268 + $0x70] sm:$0xff] %v1659
          %1692 = vst [vmem:[%s268 + $0x78] sm:$0xff] %v1660
          %1693 = vst [vmem:[%s268 + $0x80] sm:$0xff] %v1661
          %1694 = vst [vmem:[%s268 + $0x88] sm:$0xff] %v1662
          %1695 = vst [vmem:[%s268 + $0x90] sm:$0xff] %v1663
          %1696 = vst [vmem:[%s268 + $0x98] sm:$0xff] %v1664
          %1697 = vst [vmem:[%s268 + $0xa0] sm:$0xff] %v1665
          %1698 = vst [vmem:[%s268 + $0xa8] sm:$0xff] %v1666
          %1699 = vst [vmem:[%s268 + $0xb0] sm:$0xff] %v1667
          %1700 = vst [vmem:[%s268 + $0xb8] sm:$0xff] %v1668
          %1701 = vst [vmem:[%s268 + $0xc0] sm:$0xff] %v1669
          %1702 = vst [vmem:[%s268 + $0xc8] sm:$0xff] %v1670
          %1703 = vst [vmem:[%s268 + $0xd0] sm:$0xff] %v1671
          %1704 = vst [vmem:[%s268 + $0xd8] sm:$0xff] %v1672
          %1705 = vst [vmem:[%s268 + $0xe0] sm:$0xff] %v1673
          %1706 = vst [vmem:[%s268 + $0xe8] sm:$0xff] %v1674
          %1707 = vst [vmem:[%s268 + $0xf0] sm:$0xff] %v1675
          %1708 = vst [vmem:[%s268 + $0xf8] sm:$0xff] %v1676
        $region40: #{tpu_custom_call.1} parent=27 // pred_fallthru
          _
        %s1709 = sand.u32 %s110, 1
        %s1710 = scalar_lea.sflag [#allocation5], %s1709
        %s1711 = sand.u32 %s110, 1
        %s1712 = smul.addr %s1711, 256
        %s1713 = scalar_lea.vmem [#allocation6], %s1712
        %s1714 = sand.u32 %s25, 1
        %s1715 = scalar_lea.sflag [#allocation8], %s1714
        %s1716 = sand.u32 %s138, 1
        %s1717 = smul.addr %s1716, 8
        %s1718 = scalar_lea.vmem [#allocation7], %s1717
        %s1719 = sand.u32 %s25, 1
        %s1720 = scalar_lea.sflag [#allocation8], %s1719
        %s1721 = sand.u32 %s166, 1
        %s1722 = smul.addr %s1721, 24
        %s1723 = scalar_lea.vmem [#allocation9], %s1722
        // Predicated region
        $region41: #{tpu_custom_call.1} parent=27 // pred_check
          %p1724 = pneg %p120
        $region42: #{tpu_custom_call.1} parent=27 // pred_check_branch
          %1726 = sbr.rel (%p1724) target = $region44
        $region43: #{tpu_custom_call.1} parent=27 // pred_region
          %s1727 = smul.u32 8, %s31
          %s1729 = ssub.s32 4096, 4096
          %1730 = vsyncadd %s1710, %s1729
          %s1731 = smul.addr %s30, 32
          %s1732 = sadd.s32 %s1727, %s1731
          %s1733 = smul.addr %s1732, 128
          %s1734 = scalar_lea.hbm %s2, %s1733
          %s1735 = sshll.u32 %s1713, 4
          %s1736 = int_to_ptr.vmem [resolvable:$true] %s1735
          %1741 = dma.vmem_to_hbm [thread:$0]  %s1736, 4096, %s1734, %s1710, 1024, 1024, 64
        $region44: #{tpu_custom_call.1} parent=27 // pred_fallthru
          _
        // Predicated region
        $region45: #{tpu_custom_call.1} parent=27 // pred_check
          %p1742 = pneg %p148
        $region46: #{tpu_custom_call.1} parent=27 // pred_check_branch
          %1744 = sbr.rel (%p1742) target = $region48
        $region47: #{tpu_custom_call.1} parent=27 // pred_region
          %s1746 = ssub.s32 128, 128
          %1747 = vsyncadd %s1715, %s1746
          %s1748 = sadd.s32 %s31, %s30
          %s1749 = smul.addr %s1748, 128
          %s1750 = scalar_lea.hbm %s3, %s1749
          %s1752 = sshll.u32 %s1718, 4
          %s1753 = int_to_ptr.vmem [resolvable:$true] %s1752
          %1755 = dma.vmem_to_hbm [thread:$0]  %s1753, 128, %s1750, %s1715
        $region48: #{tpu_custom_call.1} parent=27 // pred_fallthru
          _
        // Predicated region
        $region49: #{tpu_custom_call.1} parent=27 // pred_check
          %p1756 = pneg %p176
        $region50: #{tpu_custom_call.1} parent=27 // pred_check_branch
          %1758 = sbr.rel (%p1756) target = $region52
        $region51: #{tpu_custom_call.1} parent=27 // pred_region
          %s1760 = ssub.s32 384, 384
          %1761 = vsyncadd %s1720, %s1760
          %s1762 = smul.addr %s30, 3
          %s1763 = sadd.s32 %s31, %s1762
          %s1764 = smul.addr %s1763, 128
          %s1765 = scalar_lea.hbm %s4, %s1764
          %s1766 = sshll.u32 %s1723, 4
          %s1767 = int_to_ptr.vmem [resolvable:$true] %s1766
          %1772 = dma.vmem_to_hbm [thread:$0]  %s1767, 384, %s1765, %s1720, 128, 128, 8
        $region52: #{tpu_custom_call.1} parent=27 // pred_fallthru
          _
      $region28: #{tpu_custom_call.1} parent=5 // pred_fallthru
        _
      %p1773 = scmp.le.s32.totalorder 2, %s20
      // Predicated region
      $region53: #{tpu_custom_call.1} parent=5 // pred_check
        %p1774 = pneg %p1773
      $region54: #{tpu_custom_call.1} parent=5 // pred_check_branch
        %1776 = sbr.rel (%p1774) target = $region56
      $region55: #{tpu_custom_call.1} parent=5 // pred_region
        %s1777 = ssub.s32 %s20, 2
        // Predicated region
        $region57: #{tpu_custom_call.1} parent=55 // pred_check
          %p1778 = pneg %p126
        $region58: #{tpu_custom_call.1} parent=55 // pred_check_branch
          %1780 = sbr.rel (%p1778) target = $region60
        $region59: #{tpu_custom_call.1} parent=55 // pred_region
          %s1781 = sand.u32 %s111, 1
          %s1782 = scalar_lea.sflag [#allocation5], %s1781
          %s1783 = sand.u32 %s111, 1
          %s1784 = smul.addr %s1783, 256
          %s1785 = scalar_lea.vmem [#allocation6], %s1784
          %1786 = dma.done %s1782, 4096
        $region60: #{tpu_custom_call.1} parent=55 // pred_fallthru
          _
        // Predicated region
        $region61: #{tpu_custom_call.1} parent=55 // pred_check
          %p1787 = pneg %p154
        $region62: #{tpu_custom_call.1} parent=55 // pred_check_branch
          %1789 = sbr.rel (%p1787) target = $region64
        $region63: #{tpu_custom_call.1} parent=55 // pred_region
          %s1790 = sand.u32 %s26, 1
          %s1791 = scalar_lea.sflag [#allocation8], %s1790
          %s1792 = sand.u32 %s139, 1
          %s1793 = smul.addr %s1792, 8
          %s1794 = scalar_lea.vmem [#allocation7], %s1793
          %1795 = dma.done %s1791, 128
        $region64: #{tpu_custom_call.1} parent=55 // pred_fallthru
          _
        // Predicated region
        $region65: #{tpu_custom_call.1} parent=55 // pred_check
          %p1796 = pneg %p182
        $region66: #{tpu_custom_call.1} parent=55 // pred_check_branch
          %1798 = sbr.rel (%p1796) target = $region68
        $region67: #{tpu_custom_call.1} parent=55 // pred_region
          %s1799 = sand.u32 %s26, 1
          %s1800 = scalar_lea.sflag [#allocation8], %s1799
          %s1801 = sand.u32 %s167, 1
          %s1802 = smul.addr %s1801, 24
          %s1803 = scalar_lea.vmem [#allocation9], %s1802
          %1804 = dma.done %s1800, 384
        $region68: #{tpu_custom_call.1} parent=55 // pred_fallthru
          _
      $region56: #{tpu_custom_call.1} parent=5 // pred_fallthru
        _
    $region6: #{tpu_custom_call.1} parent=1 // loop_footer
      %s24 = sadd.s32 1, %s20
    $region7: #{tpu_custom_call.1} parent=1 // loop_footer_branch
      %19 = sbr.rel target = $region3
    $region8: #{tpu_custom_call.1} parent=1 // loop_exit
      _
    %1805 = vsyncpa [#allocation4], 1
    %s1806 = scalar_lea.sflag [#allocation4], 1
    %1807 = vsyncpa %s1806, 1
    %1808 = vsyncpa [#allocation5], 1
    %s1809 = scalar_lea.sflag [#allocation5], 1
    %1810 = vsyncpa %s1809, 1
    %1811 = vsyncpa [#allocation8], 1
    %s1812 = scalar_lea.sflag [#allocation8], 1
    %1813 = vsyncpa %s1812, 1

</llo_original>
